<compile_context>
chip_gen: v7x
topology: tpu7x:2x2x1
jax: 0.10.0
libtpu: 0.0.40
codegen_flags: <defaults>
</compile_context>

<pallas_src>
import jax
import jax.numpy as jnp
import numpy as np
from jax import lax
from jax.experimental import pallas as pl
from jax.experimental.pallas import tpu as pltpu


def rnn_kernel(a1_ref, whh1_ref, w2_ref, b2_ref, whh2_ref, seq_ref, hid_ref):
    """Two-layer recurrence.  a1_ref already holds x@Wih1^T + bih1 + bhh1.

    Shapes (all f32, HP = hidden padded to 128, BP = batch padded to 8):
      a1_ref:  (T*BP, HP)   precomputed layer-1 input projection, time-major
      whh1_ref,(HP, HP)     Whh1^T   (zero padded)
      w2_ref:  (HP, HP)     Wih2^T   (zero padded)
      b2_ref:  (1, HP)      bih2 + bhh2
      whh2_ref:(HP, HP)     Whh2^T
      seq_ref: (T*BP, HP)   OUT: per-step layer-2 hidden (also used as staging)
      hid_ref: (2, BP, HP)  OUT: final hidden state
    """
    TBP, HP = a1_ref.shape
    BP = hid_ref.shape[1]
    T = TBP // BP
    UNROLL = min(8, T)

    # Loop-invariant weight loads hoisted out of the (unrolled) loops.
    whh1 = whh1_ref[...]
    whh2 = whh2_ref[...]
    h0 = jnp.zeros((BP, HP), jnp.float32)

    # ---- Phase A: layer-1 recurrence (only h1 @ Whh1^T on the serial path) ----
    def step1(t, h1):
        off = pl.multiple_of(t * BP, 8)
        h1n = jnp.tanh(
            a1_ref[pl.ds(off, BP), :]
            + jnp.dot(h1, whh1, preferred_element_type=jnp.float32))
        seq_ref[pl.ds(off, BP), :] = h1n        # staging for the batched layer-2 proj
        return h1n

    h1f = lax.fori_loop(0, T, step1, h0, unroll=UNROLL)

    # ---- Layer-2 input projection: ONE large-M matmul over all timesteps ----
    a2 = (jnp.dot(seq_ref[...], w2_ref[...], preferred_element_type=jnp.float32)
          + b2_ref[...])
    seq_ref[...] = a2

    # ---- Phase B: layer-2 recurrence (only h2 @ Whh2^T on the serial path) ----
    def step2(t, h2):
        off = pl.multiple_of(t * BP, 8)
        h2n = jnp.tanh(
            seq_ref[pl.ds(off, BP), :]
            + jnp.dot(h2, whh2, preferred_element_type=jnp.float32))
        seq_ref[pl.ds(off, BP), :] = h2n
        return h2n

    h2f = lax.fori_loop(0, T, step2, h0, unroll=UNROLL)

    # Final hidden, written once.
    hid_ref[0] = h1f
    hid_ref[1] = h2f


def _pad_up(n, m):
    return ((n + m - 1) // m) * m


def rnn_forward(x, params):
    """x: (B, T, D) float32.  Returns (sigmoid_out (B*T, 1), hidden (2, B, H))."""
    B, T, D = x.shape
    H = params["whh1"].shape[0]
    f32 = jnp.float32

    HP = _pad_up(H, 128)   # hidden lanes
    BP = _pad_up(B, 8)     # batch sublanes (keeps per-step slices tile-aligned)
    TBP = T * BP

    # Hoisted layer-1 input projection: one large-M matmul on the UNPADDED D,
    # time-major so kernel per-step slices are contiguous 8-sublane tiles.
    x_tm = jnp.transpose(x, (1, 0, 2)).astype(f32)                      # (T, B, D)
    a1 = (jnp.einsum("tbd,hd->tbh", x_tm, params["wih1"].astype(f32))
          + (params["bih1"] + params["bhh1"]).astype(f32))              # (T, B, H)
    a1_pad = (jnp.zeros((T, BP, HP), f32).at[:, :B, :H].set(a1)
              .reshape(TBP, HP))

    def pad_sq(w):  # W^T zero-padded into (HP, HP); padded lanes stay exactly 0
        return jnp.zeros((HP, HP), f32).at[:H, :H].set(w.T.astype(f32))

    whh1 = pad_sq(params["whh1"])
    w2 = pad_sq(params["wih2"])
    whh2 = pad_sq(params["whh2"])
    b2 = jnp.zeros((1, HP), f32).at[0, :H].set(
        (params["bih2"] + params["bhh2"]).astype(f32))

    vmem = pl.BlockSpec(memory_space=pltpu.MemorySpace.VMEM)

    seq2, hid = pl.pallas_call(
        rnn_kernel,
        out_shape=(
            jax.ShapeDtypeStruct((TBP, HP), f32),    # per-step layer-2 hidden
            jax.ShapeDtypeStruct((2, BP, HP), f32),  # final hidden (padded)
        ),
        in_specs=[vmem, vmem, vmem, vmem, vmem],
        out_specs=(vmem, vmem),
    )(a1_pad, whh1, w2, b2, whh2)

    # FC + sigmoid in the wrapper: width-1 output would force masked lane-1
    # stores inside the kernel (review-recommended placement).
    seq_bt = jnp.transpose(seq2.reshape(T, BP, HP)[:, :B, :H], (1, 0, 2))  # (B,T,H)
    flat = seq_bt.reshape(B * T, H)
    out = jax.nn.sigmoid(flat @ params["fcw"].T.astype(f32)
                         + params["fcb"].astype(f32))
    hidden = hid[:, :B, :H]
    return out, hidden


def ref_forward(x, params):
    """Pure-JAX reference of the same forward pass."""
    B, T, D = x.shape
    H = params["whh1"].shape[0]
    h1 = jnp.zeros((B, H), jnp.float32)
    h2 = jnp.zeros((B, H), jnp.float32)
    outs = []
    for t in range(T):
        xt = x[:, t, :]
        h1 = jnp.tanh(xt @ params["wih1"].T + params["bih1"]
                      + h1 @ params["whh1"].T + params["bhh1"])
        h2 = jnp.tanh(h1 @ params["wih2"].T + params["bih2"]
                      + h2 @ params["whh2"].T + params["bhh2"])
        outs.append(h2)
    seq = jnp.stack(outs, axis=1)               # (B, T, H)
    flat = seq.reshape(-1, H)
    out = jax.nn.sigmoid(flat @ params["fcw"].T + params["fcb"])
    hidden = jnp.stack([h1, h2], axis=0)
    return out, hidden


def init_params(key, input_size, hidden_size, output_size):
    ks = jax.random.split(key, 11)
    s = 1.0 / np.sqrt(hidden_size)
    u = lambda k, shape: jax.random.uniform(k, shape, jnp.float32, -s, s)
    return {
        "wih1": u(ks[0], (hidden_size, input_size)),
        "whh1": u(ks[1], (hidden_size, hidden_size)),
        "bih1": u(ks[2], (hidden_size,)),
        "bhh1": u(ks[3], (hidden_size,)),
        "wih2": u(ks[4], (hidden_size, hidden_size)),
        "whh2": u(ks[5], (hidden_size, hidden_size)),
        "bih2": u(ks[6], (hidden_size,)),
        "bhh2": u(ks[7], (hidden_size,)),
        "fcw": u(ks[8], (output_size, hidden_size)),
        "fcb": u(ks[9], (output_size,)),
    }


if __name__ == "__main__":
    B, T, D, H, O = 2, 8, 40, 64, 1
    key = jax.random.PRNGKey(0)
    kx, kp = jax.random.split(key)
    x = jax.random.normal(kx, (B, T, D), jnp.float32)
    params = init_params(kp, D, H, O)

    out, hidden = rnn_forward(x, params)
    out = jax.block_until_ready(out)
    hidden = jax.block_until_ready(hidden)

    out_ref, hidden_ref = ref_forward(x, params)
    np.testing.assert_allclose(np.asarray(out), np.asarray(out_ref),
                               rtol=1e-4, atol=1e-4)
    np.testing.assert_allclose(np.asarray(hidden), np.asarray(hidden_ref),
                               rtol=1e-4, atol=1e-4)

    print("KERNEL_OK")
</pallas_src>

<mosaic_0001>
module attributes {stable_mosaic.version = 11 : i64} {
  func.func @rnn_kernel(%arg0: memref<64x128xf32, #tpu.memory_space<vmem>>, %arg1: memref<128x128xf32, #tpu.memory_space<vmem>>, %arg2: memref<128x128xf32, #tpu.memory_space<vmem>>, %arg3: memref<1x128xf32, #tpu.memory_space<vmem>>, %arg4: memref<128x128xf32, #tpu.memory_space<vmem>>, %arg5: memref<64x128xf32, #tpu.memory_space<vmem>>, %arg6: memref<2x8x128xf32, #tpu.memory_space<vmem>>) attributes {dimension_semantics = [], scalar_prefetch = 0 : i64, scratch_operands = 0 : i64, tpu.core_type = #tpu.core_type<tc>} {
    %c0 = arith.constant 0 : index
    %c0_0 = arith.constant 0 : index
    %0 = vector.load %arg1[%c0, %c0_0] : memref<128x128xf32, #tpu.memory_space<vmem>>, vector<128x128xf32>
    %c0_1 = arith.constant 0 : index
    %c0_2 = arith.constant 0 : index
    %1 = vector.load %arg4[%c0_1, %c0_2] : memref<128x128xf32, #tpu.memory_space<vmem>>, vector<128x128xf32>
    %cst = arith.constant 0.000000e+00 : f32
    %2 = vector.broadcast %cst : f32 to vector<8x128xf32>
    %c0_i32 = arith.constant 0 : i32
    %c8_i32 = arith.constant 8 : i32
    %3 = arith.muli %c0_i32, %c8_i32 : i32
    %4 = tpu.assume_multiple %3, 8 : i32
    %5 = arith.index_cast %4 : i32 to index
    %c0_3 = arith.constant 0 : index
    %6 = vector.load %arg0[%5, %c0_3] : memref<64x128xf32, #tpu.memory_space<vmem>>, vector<8x128xf32>
    %cst_4 = arith.constant dense<0.000000e+00> : vector<8x128xf32>
    %7 = tpu.matmul %2, %0, %cst_4 {dimension_numbers = #tpu.dot_dimension_numbers<[1], [0], [0], [1], [0, 0, 1, 1], [], []>} : vector<8x128xf32>, vector<128x128xf32>, vector<8x128xf32> -> vector<8x128xf32>
    %8 = arith.addf %6, %7 : vector<8x128xf32>
    %9 = math.tanh %8 : vector<8x128xf32>
    %10 = arith.index_cast %4 : i32 to index
    %c0_5 = arith.constant 0 : index
    %11 = vector.load %arg5[%10, %c0_5] : memref<64x128xf32, #tpu.memory_space<vmem>>, vector<8x128xf32>
    tpu.vector_store %arg5[%10, %c0_5], %9 {strides = array<i32>} : memref<64x128xf32, #tpu.memory_space<vmem>>, vector<8x128xf32>,
    %c1_i32 = arith.constant 1 : i32
    %c8_i32_6 = arith.constant 8 : i32
    %12 = arith.muli %c1_i32, %c8_i32_6 : i32
    %13 = tpu.assume_multiple %12, 8 : i32
    %14 = arith.index_cast %13 : i32 to index
    %c0_7 = arith.constant 0 : index
    %15 = vector.load %arg0[%14, %c0_7] : memref<64x128xf32, #tpu.memory_space<vmem>>, vector<8x128xf32>
    %cst_8 = arith.constant dense<0.000000e+00> : vector<8x128xf32>
    %16 = tpu.matmul %9, %0, %cst_8 {dimension_numbers = #tpu.dot_dimension_numbers<[1], [0], [0], [1], [0, 0, 1, 1], [], []>} : vector<8x128xf32>, vector<128x128xf32>, vector<8x128xf32> -> vector<8x128xf32>
    %17 = arith.addf %15, %16 : vector<8x128xf32>
    %18 = math.tanh %17 : vector<8x128xf32>
    %19 = arith.index_cast %13 : i32 to index
    %c0_9 = arith.constant 0 : index
    %20 = vector.load %arg5[%19, %c0_9] : memref<64x128xf32, #tpu.memory_space<vmem>>, vector<8x128xf32>
    tpu.vector_store %arg5[%19, %c0_9], %18 {strides = array<i32>} : memref<64x128xf32, #tpu.memory_space<vmem>>, vector<8x128xf32>,
    %c2_i32 = arith.constant 2 : i32
    %c8_i32_10 = arith.constant 8 : i32
    %21 = arith.muli %c2_i32, %c8_i32_10 : i32
    %22 = tpu.assume_multiple %21, 8 : i32
    %23 = arith.index_cast %22 : i32 to index
    %c0_11 = arith.constant 0 : index
    %24 = vector.load %arg0[%23, %c0_11] : memref<64x128xf32, #tpu.memory_space<vmem>>, vector<8x128xf32>
    %cst_12 = arith.constant dense<0.000000e+00> : vector<8x128xf32>
    %25 = tpu.matmul %18, %0, %cst_12 {dimension_numbers = #tpu.dot_dimension_numbers<[1], [0], [0], [1], [0, 0, 1, 1], [], []>} : vector<8x128xf32>, vector<128x128xf32>, vector<8x128xf32> -> vector<8x128xf32>
    %26 = arith.addf %24, %25 : vector<8x128xf32>
    %27 = math.tanh %26 : vector<8x128xf32>
    %28 = arith.index_cast %22 : i32 to index
    %c0_13 = arith.constant 0 : index
    %29 = vector.load %arg5[%28, %c0_13] : memref<64x128xf32, #tpu.memory_space<vmem>>, vector<8x128xf32>
    tpu.vector_store %arg5[%28, %c0_13], %27 {strides = array<i32>} : memref<64x128xf32, #tpu.memory_space<vmem>>, vector<8x128xf32>,
    %c3_i32 = arith.constant 3 : i32
    %c8_i32_14 = arith.constant 8 : i32
    %30 = arith.muli %c3_i32, %c8_i32_14 : i32
    %31 = tpu.assume_multiple %30, 8 : i32
    %32 = arith.index_cast %31 : i32 to index
    %c0_15 = arith.constant 0 : index
    %33 = vector.load %arg0[%32, %c0_15] : memref<64x128xf32, #tpu.memory_space<vmem>>, vector<8x128xf32>
    %cst_16 = arith.constant dense<0.000000e+00> : vector<8x128xf32>
    %34 = tpu.matmul %27, %0, %cst_16 {dimension_numbers = #tpu.dot_dimension_numbers<[1], [0], [0], [1], [0, 0, 1, 1], [], []>} : vector<8x128xf32>, vector<128x128xf32>, vector<8x128xf32> -> vector<8x128xf32>
    %35 = arith.addf %33, %34 : vector<8x128xf32>
    %36 = math.tanh %35 : vector<8x128xf32>
    %37 = arith.index_cast %31 : i32 to index
    %c0_17 = arith.constant 0 : index
    %38 = vector.load %arg5[%37, %c0_17] : memref<64x128xf32, #tpu.memory_space<vmem>>, vector<8x128xf32>
    tpu.vector_store %arg5[%37, %c0_17], %36 {strides = array<i32>} : memref<64x128xf32, #tpu.memory_space<vmem>>, vector<8x128xf32>,
    %c4_i32 = arith.constant 4 : i32
    %c8_i32_18 = arith.constant 8 : i32
    %39 = arith.muli %c4_i32, %c8_i32_18 : i32
    %40 = tpu.assume_multiple %39, 8 : i32
    %41 = arith.index_cast %40 : i32 to index
    %c0_19 = arith.constant 0 : index
    %42 = vector.load %arg0[%41, %c0_19] : memref<64x128xf32, #tpu.memory_space<vmem>>, vector<8x128xf32>
    %cst_20 = arith.constant dense<0.000000e+00> : vector<8x128xf32>
    %43 = tpu.matmul %36, %0, %cst_20 {dimension_numbers = #tpu.dot_dimension_numbers<[1], [0], [0], [1], [0, 0, 1, 1], [], []>} : vector<8x128xf32>, vector<128x128xf32>, vector<8x128xf32> -> vector<8x128xf32>
    %44 = arith.addf %42, %43 : vector<8x128xf32>
    %45 = math.tanh %44 : vector<8x128xf32>
    %46 = arith.index_cast %40 : i32 to index
    %c0_21 = arith.constant 0 : index
    %47 = vector.load %arg5[%46, %c0_21] : memref<64x128xf32, #tpu.memory_space<vmem>>, vector<8x128xf32>
    tpu.vector_store %arg5[%46, %c0_21], %45 {strides = array<i32>} : memref<64x128xf32, #tpu.memory_space<vmem>>, vector<8x128xf32>,
    %c5_i32 = arith.constant 5 : i32
    %c8_i32_22 = arith.constant 8 : i32
    %48 = arith.muli %c5_i32, %c8_i32_22 : i32
    %49 = tpu.assume_multiple %48, 8 : i32
    %50 = arith.index_cast %49 : i32 to index
    %c0_23 = arith.constant 0 : index
    %51 = vector.load %arg0[%50, %c0_23] : memref<64x128xf32, #tpu.memory_space<vmem>>, vector<8x128xf32>
    %cst_24 = arith.constant dense<0.000000e+00> : vector<8x128xf32>
    %52 = tpu.matmul %45, %0, %cst_24 {dimension_numbers = #tpu.dot_dimension_numbers<[1], [0], [0], [1], [0, 0, 1, 1], [], []>} : vector<8x128xf32>, vector<128x128xf32>, vector<8x128xf32> -> vector<8x128xf32>
    %53 = arith.addf %51, %52 : vector<8x128xf32>
    %54 = math.tanh %53 : vector<8x128xf32>
    %55 = arith.index_cast %49 : i32 to index
    %c0_25 = arith.constant 0 : index
    %56 = vector.load %arg5[%55, %c0_25] : memref<64x128xf32, #tpu.memory_space<vmem>>, vector<8x128xf32>
    tpu.vector_store %arg5[%55, %c0_25], %54 {strides = array<i32>} : memref<64x128xf32, #tpu.memory_space<vmem>>, vector<8x128xf32>,
    %c6_i32 = arith.constant 6 : i32
    %c8_i32_26 = arith.constant 8 : i32
    %57 = arith.muli %c6_i32, %c8_i32_26 : i32
    %58 = tpu.assume_multiple %57, 8 : i32
    %59 = arith.index_cast %58 : i32 to index
    %c0_27 = arith.constant 0 : index
    %60 = vector.load %arg0[%59, %c0_27] : memref<64x128xf32, #tpu.memory_space<vmem>>, vector<8x128xf32>
    %cst_28 = arith.constant dense<0.000000e+00> : vector<8x128xf32>
    %61 = tpu.matmul %54, %0, %cst_28 {dimension_numbers = #tpu.dot_dimension_numbers<[1], [0], [0], [1], [0, 0, 1, 1], [], []>} : vector<8x128xf32>, vector<128x128xf32>, vector<8x128xf32> -> vector<8x128xf32>
    %62 = arith.addf %60, %61 : vector<8x128xf32>
    %63 = math.tanh %62 : vector<8x128xf32>
    %64 = arith.index_cast %58 : i32 to index
    %c0_29 = arith.constant 0 : index
    %65 = vector.load %arg5[%64, %c0_29] : memref<64x128xf32, #tpu.memory_space<vmem>>, vector<8x128xf32>
    tpu.vector_store %arg5[%64, %c0_29], %63 {strides = array<i32>} : memref<64x128xf32, #tpu.memory_space<vmem>>, vector<8x128xf32>,
    %c7_i32 = arith.constant 7 : i32
    %c8_i32_30 = arith.constant 8 : i32
    %66 = arith.muli %c7_i32, %c8_i32_30 : i32
    %67 = tpu.assume_multiple %66, 8 : i32
    %68 = arith.index_cast %67 : i32 to index
    %c0_31 = arith.constant 0 : index
    %69 = vector.load %arg0[%68, %c0_31] : memref<64x128xf32, #tpu.memory_space<vmem>>, vector<8x128xf32>
    %cst_32 = arith.constant dense<0.000000e+00> : vector<8x128xf32>
    %70 = tpu.matmul %63, %0, %cst_32 {dimension_numbers = #tpu.dot_dimension_numbers<[1], [0], [0], [1], [0, 0, 1, 1], [], []>} : vector<8x128xf32>, vector<128x128xf32>, vector<8x128xf32> -> vector<8x128xf32>
    %71 = arith.addf %69, %70 : vector<8x128xf32>
    %72 = math.tanh %71 : vector<8x128xf32>
    %73 = arith.index_cast %67 : i32 to index
    %c0_33 = arith.constant 0 : index
    %74 = vector.load %arg5[%73, %c0_33] : memref<64x128xf32, #tpu.memory_space<vmem>>, vector<8x128xf32>
    tpu.vector_store %arg5[%73, %c0_33], %72 {strides = array<i32>} : memref<64x128xf32, #tpu.memory_space<vmem>>, vector<8x128xf32>,
    %c8_i32_34 = arith.constant 8 : i32
    %c0_35 = arith.constant 0 : index
    %c0_36 = arith.constant 0 : index
    %75 = vector.load %arg5[%c0_35, %c0_36] : memref<64x128xf32, #tpu.memory_space<vmem>>, vector<64x128xf32>
    %c0_37 = arith.constant 0 : index
    %c0_38 = arith.constant 0 : index
    %76 = vector.load %arg2[%c0_37, %c0_38] : memref<128x128xf32, #tpu.memory_space<vmem>>, vector<128x128xf32>
    %cst_39 = arith.constant dense<0.000000e+00> : vector<64x128xf32>
    %77 = tpu.matmul %75, %76, %cst_39 {dimension_numbers = #tpu.dot_dimension_numbers<[1], [0], [0], [1], [0, 0, 1, 1], [], []>} : vector<64x128xf32>, vector<128x128xf32>, vector<64x128xf32> -> vector<64x128xf32>
    %c0_40 = arith.constant 0 : index
    %c0_41 = arith.constant 0 : index
    %78 = vector.load %arg3[%c0_40, %c0_41] : memref<1x128xf32, #tpu.memory_space<vmem>>, vector<1x128xf32>
    %79 = vector.broadcast %78 : vector<1x128xf32> to vector<64x128xf32>
    %80 = arith.addf %77, %79 : vector<64x128xf32>
    %c0_42 = arith.constant 0 : index
    %c0_43 = arith.constant 0 : index
    %81 = vector.load %arg5[%c0_42, %c0_43] : memref<64x128xf32, #tpu.memory_space<vmem>>, vector<64x128xf32>
    tpu.vector_store %arg5[%c0_42, %c0_43], %80 {strides = array<i32>} : memref<64x128xf32, #tpu.memory_space<vmem>>, vector<64x128xf32>,
    %c0_i32_44 = arith.constant 0 : i32
    %c8_i32_45 = arith.constant 8 : i32
    %82 = arith.muli %c0_i32_44, %c8_i32_45 : i32
    %83 = tpu.assume_multiple %82, 8 : i32
    %84 = arith.index_cast %83 : i32 to index
    %c0_46 = arith.constant 0 : index
    %85 = vector.load %arg5[%84, %c0_46] : memref<64x128xf32, #tpu.memory_space<vmem>>, vector<8x128xf32>
    %cst_47 = arith.constant dense<0.000000e+00> : vector<8x128xf32>
    %86 = tpu.matmul %2, %1, %cst_47 {dimension_numbers = #tpu.dot_dimension_numbers<[1], [0], [0], [1], [0, 0, 1, 1], [], []>} : vector<8x128xf32>, vector<128x128xf32>, vector<8x128xf32> -> vector<8x128xf32>
    %87 = arith.addf %85, %86 : vector<8x128xf32>
    %88 = math.tanh %87 : vector<8x128xf32>
    %89 = arith.index_cast %83 : i32 to index
    %c0_48 = arith.constant 0 : index
    %90 = vector.load %arg5[%89, %c0_48] : memref<64x128xf32, #tpu.memory_space<vmem>>, vector<8x128xf32>
    tpu.vector_store %arg5[%89, %c0_48], %88 {strides = array<i32>} : memref<64x128xf32, #tpu.memory_space<vmem>>, vector<8x128xf32>,
    %c1_i32_49 = arith.constant 1 : i32
    %c8_i32_50 = arith.constant 8 : i32
    %91 = arith.muli %c1_i32_49, %c8_i32_50 : i32
    %92 = tpu.assume_multiple %91, 8 : i32
    %93 = arith.index_cast %92 : i32 to index
    %c0_51 = arith.constant 0 : index
    %94 = vector.load %arg5[%93, %c0_51] : memref<64x128xf32, #tpu.memory_space<vmem>>, vector<8x128xf32>
    %cst_52 = arith.constant dense<0.000000e+00> : vector<8x128xf32>
    %95 = tpu.matmul %88, %1, %cst_52 {dimension_numbers = #tpu.dot_dimension_numbers<[1], [0], [0], [1], [0, 0, 1, 1], [], []>} : vector<8x128xf32>, vector<128x128xf32>, vector<8x128xf32> -> vector<8x128xf32>
    %96 = arith.addf %94, %95 : vector<8x128xf32>
    %97 = math.tanh %96 : vector<8x128xf32>
    %98 = arith.index_cast %92 : i32 to index
    %c0_53 = arith.constant 0 : index
    %99 = vector.load %arg5[%98, %c0_53] : memref<64x128xf32, #tpu.memory_space<vmem>>, vector<8x128xf32>
    tpu.vector_store %arg5[%98, %c0_53], %97 {strides = array<i32>} : memref<64x128xf32, #tpu.memory_space<vmem>>, vector<8x128xf32>,
    %c2_i32_54 = arith.constant 2 : i32
    %c8_i32_55 = arith.constant 8 : i32
    %100 = arith.muli %c2_i32_54, %c8_i32_55 : i32
    %101 = tpu.assume_multiple %100, 8 : i32
    %102 = arith.index_cast %101 : i32 to index
    %c0_56 = arith.constant 0 : index
    %103 = vector.load %arg5[%102, %c0_56] : memref<64x128xf32, #tpu.memory_space<vmem>>, vector<8x128xf32>
    %cst_57 = arith.constant dense<0.000000e+00> : vector<8x128xf32>
    %104 = tpu.matmul %97, %1, %cst_57 {dimension_numbers = #tpu.dot_dimension_numbers<[1], [0], [0], [1], [0, 0, 1, 1], [], []>} : vector<8x128xf32>, vector<128x128xf32>, vector<8x128xf32> -> vector<8x128xf32>
    %105 = arith.addf %103, %104 : vector<8x128xf32>
    %106 = math.tanh %105 : vector<8x128xf32>
    %107 = arith.index_cast %101 : i32 to index
    %c0_58 = arith.constant 0 : index
    %108 = vector.load %arg5[%107, %c0_58] : memref<64x128xf32, #tpu.memory_space<vmem>>, vector<8x128xf32>
    tpu.vector_store %arg5[%107, %c0_58], %106 {strides = array<i32>} : memref<64x128xf32, #tpu.memory_space<vmem>>, vector<8x128xf32>,
    %c3_i32_59 = arith.constant 3 : i32
    %c8_i32_60 = arith.constant 8 : i32
    %109 = arith.muli %c3_i32_59, %c8_i32_60 : i32
    %110 = tpu.assume_multiple %109, 8 : i32
    %111 = arith.index_cast %110 : i32 to index
    %c0_61 = arith.constant 0 : index
    %112 = vector.load %arg5[%111, %c0_61] : memref<64x128xf32, #tpu.memory_space<vmem>>, vector<8x128xf32>
    %cst_62 = arith.constant dense<0.000000e+00> : vector<8x128xf32>
    %113 = tpu.matmul %106, %1, %cst_62 {dimension_numbers = #tpu.dot_dimension_numbers<[1], [0], [0], [1], [0, 0, 1, 1], [], []>} : vector<8x128xf32>, vector<128x128xf32>, vector<8x128xf32> -> vector<8x128xf32>
    %114 = arith.addf %112, %113 : vector<8x128xf32>
    %115 = math.tanh %114 : vector<8x128xf32>
    %116 = arith.index_cast %110 : i32 to index
    %c0_63 = arith.constant 0 : index
    %117 = vector.load %arg5[%116, %c0_63] : memref<64x128xf32, #tpu.memory_space<vmem>>, vector<8x128xf32>
    tpu.vector_store %arg5[%116, %c0_63], %115 {strides = array<i32>} : memref<64x128xf32, #tpu.memory_space<vmem>>, vector<8x128xf32>,
    %c4_i32_64 = arith.constant 4 : i32
    %c8_i32_65 = arith.constant 8 : i32
    %118 = arith.muli %c4_i32_64, %c8_i32_65 : i32
    %119 = tpu.assume_multiple %118, 8 : i32
    %120 = arith.index_cast %119 : i32 to index
    %c0_66 = arith.constant 0 : index
    %121 = vector.load %arg5[%120, %c0_66] : memref<64x128xf32, #tpu.memory_space<vmem>>, vector<8x128xf32>
    %cst_67 = arith.constant dense<0.000000e+00> : vector<8x128xf32>
    %122 = tpu.matmul %115, %1, %cst_67 {dimension_numbers = #tpu.dot_dimension_numbers<[1], [0], [0], [1], [0, 0, 1, 1], [], []>} : vector<8x128xf32>, vector<128x128xf32>, vector<8x128xf32> -> vector<8x128xf32>
    %123 = arith.addf %121, %122 : vector<8x128xf32>
    %124 = math.tanh %123 : vector<8x128xf32>
    %125 = arith.index_cast %119 : i32 to index
    %c0_68 = arith.constant 0 : index
    %126 = vector.load %arg5[%125, %c0_68] : memref<64x128xf32, #tpu.memory_space<vmem>>, vector<8x128xf32>
    tpu.vector_store %arg5[%125, %c0_68], %124 {strides = array<i32>} : memref<64x128xf32, #tpu.memory_space<vmem>>, vector<8x128xf32>,
    %c5_i32_69 = arith.constant 5 : i32
    %c8_i32_70 = arith.constant 8 : i32
    %127 = arith.muli %c5_i32_69, %c8_i32_70 : i32
    %128 = tpu.assume_multiple %127, 8 : i32
    %129 = arith.index_cast %128 : i32 to index
    %c0_71 = arith.constant 0 : index
    %130 = vector.load %arg5[%129, %c0_71] : memref<64x128xf32, #tpu.memory_space<vmem>>, vector<8x128xf32>
    %cst_72 = arith.constant dense<0.000000e+00> : vector<8x128xf32>
    %131 = tpu.matmul %124, %1, %cst_72 {dimension_numbers = #tpu.dot_dimension_numbers<[1], [0], [0], [1], [0, 0, 1, 1], [], []>} : vector<8x128xf32>, vector<128x128xf32>, vector<8x128xf32> -> vector<8x128xf32>
    %132 = arith.addf %130, %131 : vector<8x128xf32>
    %133 = math.tanh %132 : vector<8x128xf32>
    %134 = arith.index_cast %128 : i32 to index
    %c0_73 = arith.constant 0 : index
    %135 = vector.load %arg5[%134, %c0_73] : memref<64x128xf32, #tpu.memory_space<vmem>>, vector<8x128xf32>
    tpu.vector_store %arg5[%134, %c0_73], %133 {strides = array<i32>} : memref<64x128xf32, #tpu.memory_space<vmem>>, vector<8x128xf32>,
    %c6_i32_74 = arith.constant 6 : i32
    %c8_i32_75 = arith.constant 8 : i32
    %136 = arith.muli %c6_i32_74, %c8_i32_75 : i32
    %137 = tpu.assume_multiple %136, 8 : i32
    %138 = arith.index_cast %137 : i32 to index
    %c0_76 = arith.constant 0 : index
    %139 = vector.load %arg5[%138, %c0_76] : memref<64x128xf32, #tpu.memory_space<vmem>>, vector<8x128xf32>
    %cst_77 = arith.constant dense<0.000000e+00> : vector<8x128xf32>
    %140 = tpu.matmul %133, %1, %cst_77 {dimension_numbers = #tpu.dot_dimension_numbers<[1], [0], [0], [1], [0, 0, 1, 1], [], []>} : vector<8x128xf32>, vector<128x128xf32>, vector<8x128xf32> -> vector<8x128xf32>
    %141 = arith.addf %139, %140 : vector<8x128xf32>
    %142 = math.tanh %141 : vector<8x128xf32>
    %143 = arith.index_cast %137 : i32 to index
    %c0_78 = arith.constant 0 : index
    %144 = vector.load %arg5[%143, %c0_78] : memref<64x128xf32, #tpu.memory_space<vmem>>, vector<8x128xf32>
    tpu.vector_store %arg5[%143, %c0_78], %142 {strides = array<i32>} : memref<64x128xf32, #tpu.memory_space<vmem>>, vector<8x128xf32>,
    %c7_i32_79 = arith.constant 7 : i32
    %c8_i32_80 = arith.constant 8 : i32
    %145 = arith.muli %c7_i32_79, %c8_i32_80 : i32
    %146 = tpu.assume_multiple %145, 8 : i32
    %147 = arith.index_cast %146 : i32 to index
    %c0_81 = arith.constant 0 : index
    %148 = vector.load %arg5[%147, %c0_81] : memref<64x128xf32, #tpu.memory_space<vmem>>, vector<8x128xf32>
    %cst_82 = arith.constant dense<0.000000e+00> : vector<8x128xf32>
    %149 = tpu.matmul %142, %1, %cst_82 {dimension_numbers = #tpu.dot_dimension_numbers<[1], [0], [0], [1], [0, 0, 1, 1], [], []>} : vector<8x128xf32>, vector<128x128xf32>, vector<8x128xf32> -> vector<8x128xf32>
    %150 = arith.addf %148, %149 : vector<8x128xf32>
    %151 = math.tanh %150 : vector<8x128xf32>
    %152 = arith.index_cast %146 : i32 to index
    %c0_83 = arith.constant 0 : index
    %153 = vector.load %arg5[%152, %c0_83] : memref<64x128xf32, #tpu.memory_space<vmem>>, vector<8x128xf32>
    tpu.vector_store %arg5[%152, %c0_83], %151 {strides = array<i32>} : memref<64x128xf32, #tpu.memory_space<vmem>>, vector<8x128xf32>,
    %c8_i32_84 = arith.constant 8 : i32
    %c0_85 = arith.constant 0 : index
    %c0_86 = arith.constant 0 : index
    %c0_87 = arith.constant 0 : index
    %154 = vector.load %arg6[%c0_85, %c0_86, %c0_87] : memref<2x8x128xf32, #tpu.memory_space<vmem>>, vector<1x8x128xf32>
    %155 = vector.shape_cast %154 : vector<1x8x128xf32> to vector<8x128xf32>
    %156 = vector.shape_cast %72 : vector<8x128xf32> to vector<1x8x128xf32>
    tpu.vector_store %arg6[%c0_85, %c0_86, %c0_87], %156 {strides = array<i32>} : memref<2x8x128xf32, #tpu.memory_space<vmem>>, vector<1x8x128xf32>,
    %c1 = arith.constant 1 : index
    %c0_88 = arith.constant 0 : index
    %c0_89 = arith.constant 0 : index
    %157 = vector.load %arg6[%c1, %c0_88, %c0_89] : memref<2x8x128xf32, #tpu.memory_space<vmem>>, vector<1x8x128xf32>
    %158 = vector.shape_cast %157 : vector<1x8x128xf32> to vector<8x128xf32>
    %159 = vector.shape_cast %151 : vector<8x128xf32> to vector<1x8x128xf32>
    tpu.vector_store %arg6[%c1, %c0_88, %c0_89], %159 {strides = array<i32>} : memref<2x8x128xf32, #tpu.memory_space<vmem>>, vector<1x8x128xf32>,
    return
  }
}

</mosaic_0001>

<llo_original>
// kernel: tpu_custom_call.1
$region0: #{tpu_custom_call.1}
  #allocation0 [shape = 'u32[]', space=smem, size = 0x4, offset = 0x4, fixed_abs, tag = 'smem constant byte address 0x4 - core index']
  #allocation1 [shape = 'u32[144,128]{1,0:T(1,128)}', space=vmem, size = 0x12000, scoped, tag = 'internal scratch']
  %s0 = inlined_call_operand.hbm [shape: f32[64,128], index: 0, kind: input, shape index: {}]
  %s1 = inlined_call_operand.hbm [shape: f32[128,128], index: 1, kind: input, shape index: {}]
  %s2 = inlined_call_operand.hbm [shape: f32[128,128], index: 2, kind: input, shape index: {}]
  %s3 = inlined_call_operand.vmem [shape: f32[1,128], index: 3, kind: input, shape index: {}]
  %s4 = inlined_call_operand.hbm [shape: f32[128,128], index: 4, kind: input, shape index: {}]
  %s5 = inlined_call_operand.hbm [shape: f32[64,128], index: 5, kind: output, shape index: {0}]
  %s6 = inlined_call_operand.hbm [shape: f32[2,8,128], index: 6, kind: output, shape index: {1}]
  %7 = xla_tuple %s5, %s6
  %s8 = sld [smem:[#allocation0]]
  $region54: #{tpu_custom_call.1} parent=0
    _
  %s10 = ssub.s32 1, %s8
  %s11 = scalar_select 0, %s10, %s8
  $region1: #{tpu_custom_call.1} parent=0
    #allocation2 [shape = 'u8[32768]{0}', space=vmem, size = 0x8000, scoped, tag = 'input window, operand 0, single buffered']
    #allocation3 [shape = 's32[1]{0}', space=sflag, size = 0x4, scoped, tag = 'scoped memory for tpu_custom_call.1']
    #allocation4 [shape = 's32[1]{0}', space=sflag, size = 0x4, scoped, tag = 'scoped memory for tpu_custom_call.1']
    #allocation5 [shape = 'u8[65536]{0}', space=vmem, size = 0x10000, scoped, tag = 'input window, operand 1, single buffered']
    #allocation6 [shape = 's32[1]{0}', space=sflag, size = 0x4, scoped, tag = 'scoped memory for tpu_custom_call.1']
    #allocation7 [shape = 'u8[65536]{0}', space=vmem, size = 0x10000, scoped, tag = 'input window, operand 2, single buffered']
    #allocation8 [shape = 'u8[65536]{0}', space=vmem, size = 0x10000, scoped, tag = 'input window, operand 4, single buffered']
    #allocation9 [shape = 's32[1]{0}', space=sflag, size = 0x4, scoped, tag = 'scoped memory for tpu_custom_call.1']
    #allocation10 [shape = 'u8[32768]{0}', space=vmem, size = 0x8000, scoped, tag = 'output window, operand 0, single buffered']
    #allocation11 [shape = 'u8[8192]{0}', space=vmem, size = 0x2000, scoped, tag = 'output window, operand 1, single buffered']
    #allocation12 [shape = 's32[1]{0}', space=sflag, size = 0x4, scoped, tag = 'scoped memory for tpu_custom_call.1']
    %12 = vsyncpa [#allocation3], 0
    %13 = vsyncpa [#allocation6], 0
    %14 = vsyncpa [#allocation9], 0
    %15 = vsyncpa [#allocation4], 0
    %16 = vsyncpa [#allocation12], 0
    // Predicated region
    $region2: #{tpu_custom_call.1} parent=1 // pred_check
      _
    $region3: #{tpu_custom_call.1} parent=1 // pred_check_branch
      %18 = sbr.rel (0) target = $region5
    $region4: #{tpu_custom_call.1} parent=1 // pred_region
      %s20 = ssub.s32 1024, 1024
      %21 = vsyncadd [#allocation3], %s20
      %s22 = sshll.u32 [#allocation2], 4
      %s23 = int_to_ptr.vmem [resolvable:$true] %s22
      %28 = dma.hbm_to_vmem [thread:$0]  %s0, 1024, %s23, [#allocation3], 128, 128, 8
    $region5: #{tpu_custom_call.1} parent=1 // pred_fallthru
      _
    // Predicated region
    $region6: #{tpu_custom_call.1} parent=1 // pred_check
      _
    $region7: #{tpu_custom_call.1} parent=1 // pred_check_branch
      %30 = sbr.rel (0) target = $region9
    $region8: #{tpu_custom_call.1} parent=1 // pred_region
      %s32 = ssub.s32 2048, 2048
      %33 = vsyncadd [#allocation6], %s32
      %s34 = sshll.u32 [#allocation5], 4
      %s35 = int_to_ptr.vmem [resolvable:$true] %s34
      %40 = dma.hbm_to_vmem [thread:$0]  %s1, 2048, %s35, [#allocation6], 128, 128, 8
    $region9: #{tpu_custom_call.1} parent=1 // pred_fallthru
      _
    // Predicated region
    $region10: #{tpu_custom_call.1} parent=1 // pred_check
      _
    $region11: #{tpu_custom_call.1} parent=1 // pred_check_branch
      %42 = sbr.rel (0) target = $region13
    $region12: #{tpu_custom_call.1} parent=1 // pred_region
      %s44 = ssub.s32 2048, 2048
      %45 = vsyncadd [#allocation6], %s44
      %s46 = sshll.u32 [#allocation7], 4
      %s47 = int_to_ptr.vmem [resolvable:$true] %s46
      %52 = dma.hbm_to_vmem [thread:$0]  %s2, 2048, %s47, [#allocation6], 128, 128, 8
    $region13: #{tpu_custom_call.1} parent=1 // pred_fallthru
      _
    // Predicated region
    $region14: #{tpu_custom_call.1} parent=1 // pred_check
      _
    $region15: #{tpu_custom_call.1} parent=1 // pred_check_branch
      %54 = sbr.rel (0) target = $region17
    $region16: #{tpu_custom_call.1} parent=1 // pred_region
      _
    $region17: #{tpu_custom_call.1} parent=1 // pred_fallthru
      _
    // Predicated region
    $region18: #{tpu_custom_call.1} parent=1 // pred_check
      _
    $region19: #{tpu_custom_call.1} parent=1 // pred_check_branch
      %56 = sbr.rel (0) target = $region21
    $region20: #{tpu_custom_call.1} parent=1 // pred_region
      %s58 = ssub.s32 2048, 2048
      %59 = vsyncadd [#allocation9], %s58
      %s60 = sshll.u32 [#allocation8], 4
      %s61 = int_to_ptr.vmem [resolvable:$true] %s60
      %66 = dma.hbm_to_vmem [thread:$0]  %s4, 2048, %s61, [#allocation9], 128, 128, 8
    $region21: #{tpu_custom_call.1} parent=1 // pred_fallthru
      _
    // Predicated region
    $region22: #{tpu_custom_call.1} parent=1 // pred_check
      _
    $region23: #{tpu_custom_call.1} parent=1 // pred_check_branch
      %68 = sbr.rel (0) target = $region25
    $region24: #{tpu_custom_call.1} parent=1 // pred_region
      %69 = dma.done [#allocation3], 1024
    $region25: #{tpu_custom_call.1} parent=1 // pred_fallthru
      _
    // Predicated region
    $region26: #{tpu_custom_call.1} parent=1 // pred_check
      _
    $region27: #{tpu_custom_call.1} parent=1 // pred_check_branch
      %71 = sbr.rel (0) target = $region29
    $region28: #{tpu_custom_call.1} parent=1 // pred_region
      %72 = dma.done [#allocation6], 2048
    $region29: #{tpu_custom_call.1} parent=1 // pred_fallthru
      _
    // Predicated region
    $region30: #{tpu_custom_call.1} parent=1 // pred_check
      _
    $region31: #{tpu_custom_call.1} parent=1 // pred_check_branch
      %74 = sbr.rel (0) target = $region33
    $region32: #{tpu_custom_call.1} parent=1 // pred_region
      %75 = dma.done [#allocation6], 2048
    $region33: #{tpu_custom_call.1} parent=1 // pred_fallthru
      _
    // Predicated region
    $region34: #{tpu_custom_call.1} parent=1 // pred_check
      _
    $region35: #{tpu_custom_call.1} parent=1 // pred_check_branch
      %77 = sbr.rel (0) target = $region37
    $region36: #{tpu_custom_call.1} parent=1 // pred_region
      %78 = dma.done [#allocation9], 2048
    $region37: #{tpu_custom_call.1} parent=1 // pred_fallthru
      _
    %v79 = vld [vmem:[#allocation5] sm:$0xff]
    %v80 = vld [vmem:[#allocation5 + $0x8] sm:$0xff]
    %v81 = vld [vmem:[#allocation5 + $0x10] sm:$0xff]
    %v82 = vld [vmem:[#allocation5 + $0x18] sm:$0xff]
    %v83 = vld [vmem:[#allocation5 + $0x20] sm:$0xff]
    %v84 = vld [vmem:[#allocation5 + $0x28] sm:$0xff]
    %v85 = vld [vmem:[#allocation5 + $0x30] sm:$0xff]
    %v86 = vld [vmem:[#allocation5 + $0x38] sm:$0xff]
    %v87 = vld [vmem:[#allocation5 + $0x40] sm:$0xff]
    %v88 = vld [vmem:[#allocation5 + $0x48] sm:$0xff]
    %v89 = vld [vmem:[#allocation5 + $0x50] sm:$0xff]
    %v90 = vld [vmem:[#allocation5 + $0x58] sm:$0xff]
    %v91 = vld [vmem:[#allocation5 + $0x60] sm:$0xff]
    %v92 = vld [vmem:[#allocation5 + $0x68] sm:$0xff]
    %v93 = vld [vmem:[#allocation5 + $0x70] sm:$0xff]
    %v94 = vld [vmem:[#allocation5 + $0x78] sm:$0xff]
    %v95 = vld [vmem:[#allocation8] sm:$0xff]
    %v96 = vld [vmem:[#allocation8 + $0x8] sm:$0xff]
    %v97 = vld [vmem:[#allocation8 + $0x10] sm:$0xff]
    %v98 = vld [vmem:[#allocation8 + $0x18] sm:$0xff]
    %v99 = vld [vmem:[#allocation8 + $0x20] sm:$0xff]
    %v100 = vld [vmem:[#allocation8 + $0x28] sm:$0xff]
    %v101 = vld [vmem:[#allocation8 + $0x30] sm:$0xff]
    %v102 = vld [vmem:[#allocation8 + $0x38] sm:$0xff]
    %v103 = vld [vmem:[#allocation8 + $0x40] sm:$0xff]
    %v104 = vld [vmem:[#allocation8 + $0x48] sm:$0xff]
    %v105 = vld [vmem:[#allocation8 + $0x50] sm:$0xff]
    %v106 = vld [vmem:[#allocation8 + $0x58] sm:$0xff]
    %v107 = vld [vmem:[#allocation8 + $0x60] sm:$0xff]
    %v108 = vld [vmem:[#allocation8 + $0x68] sm:$0xff]
    %v109 = vld [vmem:[#allocation8 + $0x70] sm:$0xff]
    %v110 = vld [vmem:[#allocation8 + $0x78] sm:$0xff]
    %v111 = vld [vmem:[#allocation2] sm:$0xff]
    %112 = vmatprep.subr.mxu0 0.0
    %113 = vmatpush1.msra.mxu0 %v79
    %114 = vmatprep.subr.mxu0 0.0
    %115 = vmatpush1.msra.mxu0 %v80
    %116 = vmatprep.subr.mxu0 0.0
    %117 = vmatpush1.msra.mxu0 %v81
    %118 = vmatprep.subr.mxu0 0.0
    %119 = vmatpush1.msra.mxu0 %v82
    %120 = vmatprep.subr.mxu0 0.0
    %121 = vmatpush1.msra.mxu0 %v83
    %122 = vmatprep.subr.mxu0 0.0
    %123 = vmatpush1.msra.mxu0 %v84
    %124 = vmatprep.subr.mxu0 0.0
    %125 = vmatpush1.msra.mxu0 %v85
    %126 = vmatprep.subr.mxu0 0.0
    %127 = vmatpush1.msra.mxu0 %v86
    %128 = vmatprep.subr.mxu0 0.0
    %129 = vmatpush1.msra.mxu0 %v87
    %130 = vmatprep.subr.mxu0 0.0
    %131 = vmatpush1.msra.mxu0 %v88
    %132 = vmatprep.subr.mxu0 0.0
    %133 = vmatpush1.msra.mxu0 %v89
    %134 = vmatprep.subr.mxu0 0.0
    %135 = vmatpush1.msra.mxu0 %v90
    %136 = vmatprep.subr.mxu0 0.0
    %137 = vmatpush1.msra.mxu0 %v91
    %138 = vmatprep.subr.mxu0 0.0
    %139 = vmatpush1.msra.mxu0 %v92
    %140 = vmatprep.subr.mxu0 0.0
    %141 = vmatpush1.msra.mxu0 %v93
    %142 = vmatprep.subr.mxu0 0.0
    %143 = vmatpush1.msra.mxu0 %v94
    %144 = vmatprep.subr.mxu0 0.0
    %145 = vmatpush1.msra.mxu0 0.0
    %146 = vmatprep.subr.mxu0 0.0
    %147 = vmatpush1.msra.mxu0 0.0
    %148 = vmatprep.subr.mxu0 0.0
    %149 = vmatpush1.msra.mxu0 0.0
    %150 = vmatprep.subr.mxu0 0.0
    %151 = vmatpush1.msra.mxu0 0.0
    %152 = vmatprep.subr.mxu0 0.0
    %153 = vmatpush1.msra.mxu0 0.0
    %154 = vmatprep.subr.mxu0 0.0
    %155 = vmatpush1.msra.mxu0 0.0
    %156 = vmatprep.subr.mxu0 0.0
    %157 = vmatpush1.msra.mxu0 0.0
    %158 = vmatprep.subr.mxu0 0.0
    %159 = vmatpush1.msra.mxu0 0.0
    %160 = vmatprep.subr.mxu0 0.0
    %161 = vmatpush1.msra.mxu0 0.0
    %162 = vmatprep.subr.mxu0 0.0
    %163 = vmatpush1.msra.mxu0 0.0
    %164 = vmatprep.subr.mxu0 0.0
    %165 = vmatpush1.msra.mxu0 0.0
    %166 = vmatprep.subr.mxu0 0.0
    %167 = vmatpush1.msra.mxu0 0.0
    %168 = vmatprep.subr.mxu0 0.0
    %169 = vmatpush1.msra.mxu0 0.0
    %170 = vmatprep.subr.mxu0 0.0
    %171 = vmatpush1.msra.mxu0 0.0
    %172 = vmatprep.subr.mxu0 0.0
    %173 = vmatpush1.msra.mxu0 0.0
    %174 = vmatprep.subr.mxu0 0.0
    %175 = vmatpush1.msra.mxu0 0.0
    %176 = vmatprep.mubr.f32.mxu0 0.0
    %177 = vmatmul.mubr.f32.gmra.mrb[0].mxu0 0.0
    %v178 = vpop.f32.mrb[0].mxu0
    %v179 = vadd.f32 0.0, %v178
    %v180 = vpop.f32.mrb[0].mxu0
    %181 = vdwg.mxu0
    %v182 = vadd.f32 %v111, %v179
    %v183 = vtanh.pop %v182
    %184 = vst [vmem:[#allocation10] sm:$0xff] %v183
    %s185 = scalar_lea.vmem [#allocation2], 8
    %v186 = vld [vmem:[%s185] sm:$0xff]
    %187 = vmatprep.subr.mxu0 0.0
    %188 = vmatpush1.msra.mxu0 %v79
    %189 = vmatprep.subr.mxu0 0.0
    %190 = vmatpush1.msra.mxu0 %v80
    %191 = vmatprep.subr.mxu0 0.0
    %192 = vmatpush1.msra.mxu0 %v81
    %193 = vmatprep.subr.mxu0 0.0
    %194 = vmatpush1.msra.mxu0 %v82
    %195 = vmatprep.subr.mxu0 0.0
    %196 = vmatpush1.msra.mxu0 %v83
    %197 = vmatprep.subr.mxu0 0.0
    %198 = vmatpush1.msra.mxu0 %v84
    %199 = vmatprep.subr.mxu0 0.0
    %200 = vmatpush1.msra.mxu0 %v85
    %201 = vmatprep.subr.mxu0 0.0
    %202 = vmatpush1.msra.mxu0 %v86
    %203 = vmatprep.subr.mxu0 0.0
    %204 = vmatpush1.msra.mxu0 %v87
    %205 = vmatprep.subr.mxu0 0.0
    %206 = vmatpush1.msra.mxu0 %v88
    %207 = vmatprep.subr.mxu0 0.0
    %208 = vmatpush1.msra.mxu0 %v89
    %209 = vmatprep.subr.mxu0 0.0
    %210 = vmatpush1.msra.mxu0 %v90
    %211 = vmatprep.subr.mxu0 0.0
    %212 = vmatpush1.msra.mxu0 %v91
    %213 = vmatprep.subr.mxu0 0.0
    %214 = vmatpush1.msra.mxu0 %v92
    %215 = vmatprep.subr.mxu0 0.0
    %216 = vmatpush1.msra.mxu0 %v93
    %217 = vmatprep.subr.mxu0 0.0
    %218 = vmatpush1.msra.mxu0 %v94
    %219 = vmatprep.subr.mxu0 0.0
    %220 = vmatpush1.msra.mxu0 0.0
    %221 = vmatprep.subr.mxu0 0.0
    %222 = vmatpush1.msra.mxu0 0.0
    %223 = vmatprep.subr.mxu0 0.0
    %224 = vmatpush1.msra.mxu0 0.0
    %225 = vmatprep.subr.mxu0 0.0
    %226 = vmatpush1.msra.mxu0 0.0
    %227 = vmatprep.subr.mxu0 0.0
    %228 = vmatpush1.msra.mxu0 0.0
    %229 = vmatprep.subr.mxu0 0.0
    %230 = vmatpush1.msra.mxu0 0.0
    %231 = vmatprep.subr.mxu0 0.0
    %232 = vmatpush1.msra.mxu0 0.0
    %233 = vmatprep.subr.mxu0 0.0
    %234 = vmatpush1.msra.mxu0 0.0
    %235 = vmatprep.subr.mxu0 0.0
    %236 = vmatpush1.msra.mxu0 0.0
    %237 = vmatprep.subr.mxu0 0.0
    %238 = vmatpush1.msra.mxu0 0.0
    %239 = vmatprep.subr.mxu0 0.0
    %240 = vmatpush1.msra.mxu0 0.0
    %241 = vmatprep.subr.mxu0 0.0
    %242 = vmatpush1.msra.mxu0 0.0
    %243 = vmatprep.subr.mxu0 0.0
    %244 = vmatpush1.msra.mxu0 0.0
    %245 = vmatprep.subr.mxu0 0.0
    %246 = vmatpush1.msra.mxu0 0.0
    %247 = vmatprep.subr.mxu0 0.0
    %248 = vmatpush1.msra.mxu0 0.0
    %249 = vmatprep.subr.mxu0 0.0
    %250 = vmatpush1.msra.mxu0 0.0
    %251 = vmatprep.mubr.f32.mxu0 0.0
    %252 = vmatmul.mubr.f32.gmra.mrb[0].mxu0 %v183
    %v253 = vpop.f32.mrb[0].mxu0
    %v254 = vadd.f32 0.0, %v253
    %v255 = vpop.f32.mrb[0].mxu0
    %256 = vdwg.mxu0
    %v257 = vadd.f32 %v186, %v254
    %v258 = vtanh.pop %v257
    %s259 = scalar_lea.vmem [#allocation10], 8
    %260 = vst [vmem:[%s259] sm:$0xff] %v258
    %s261 = scalar_lea.vmem [#allocation2], 16
    %v262 = vld [vmem:[%s261] sm:$0xff]
    %263 = vmatprep.subr.mxu0 0.0
    %264 = vmatpush1.msra.mxu0 %v79
    %265 = vmatprep.subr.mxu0 0.0
    %266 = vmatpush1.msra.mxu0 %v80
    %267 = vmatprep.subr.mxu0 0.0
    %268 = vmatpush1.msra.mxu0 %v81
    %269 = vmatprep.subr.mxu0 0.0
    %270 = vmatpush1.msra.mxu0 %v82
    %271 = vmatprep.subr.mxu0 0.0
    %272 = vmatpush1.msra.mxu0 %v83
    %273 = vmatprep.subr.mxu0 0.0
    %274 = vmatpush1.msra.mxu0 %v84
    %275 = vmatprep.subr.mxu0 0.0
    %276 = vmatpush1.msra.mxu0 %v85
    %277 = vmatprep.subr.mxu0 0.0
    %278 = vmatpush1.msra.mxu0 %v86
    %279 = vmatprep.subr.mxu0 0.0
    %280 = vmatpush1.msra.mxu0 %v87
    %281 = vmatprep.subr.mxu0 0.0
    %282 = vmatpush1.msra.mxu0 %v88
    %283 = vmatprep.subr.mxu0 0.0
    %284 = vmatpush1.msra.mxu0 %v89
    %285 = vmatprep.subr.mxu0 0.0
    %286 = vmatpush1.msra.mxu0 %v90
    %287 = vmatprep.subr.mxu0 0.0
    %288 = vmatpush1.msra.mxu0 %v91
    %289 = vmatprep.subr.mxu0 0.0
    %290 = vmatpush1.msra.mxu0 %v92
    %291 = vmatprep.subr.mxu0 0.0
    %292 = vmatpush1.msra.mxu0 %v93
    %293 = vmatprep.subr.mxu0 0.0
    %294 = vmatpush1.msra.mxu0 %v94
    %295 = vmatprep.subr.mxu0 0.0
    %296 = vmatpush1.msra.mxu0 0.0
    %297 = vmatprep.subr.mxu0 0.0
    %298 = vmatpush1.msra.mxu0 0.0
    %299 = vmatprep.subr.mxu0 0.0
    %300 = vmatpush1.msra.mxu0 0.0
    %301 = vmatprep.subr.mxu0 0.0
    %302 = vmatpush1.msra.mxu0 0.0
    %303 = vmatprep.subr.mxu0 0.0
    %304 = vmatpush1.msra.mxu0 0.0
    %305 = vmatprep.subr.mxu0 0.0
    %306 = vmatpush1.msra.mxu0 0.0
    %307 = vmatprep.subr.mxu0 0.0
    %308 = vmatpush1.msra.mxu0 0.0
    %309 = vmatprep.subr.mxu0 0.0
    %310 = vmatpush1.msra.mxu0 0.0
    %311 = vmatprep.subr.mxu0 0.0
    %312 = vmatpush1.msra.mxu0 0.0
    %313 = vmatprep.subr.mxu0 0.0
    %314 = vmatpush1.msra.mxu0 0.0
    %315 = vmatprep.subr.mxu0 0.0
    %316 = vmatpush1.msra.mxu0 0.0
    %317 = vmatprep.subr.mxu0 0.0
    %318 = vmatpush1.msra.mxu0 0.0
    %319 = vmatprep.subr.mxu0 0.0
    %320 = vmatpush1.msra.mxu0 0.0
    %321 = vmatprep.subr.mxu0 0.0
    %322 = vmatpush1.msra.mxu0 0.0
    %323 = vmatprep.subr.mxu0 0.0
    %324 = vmatpush1.msra.mxu0 0.0
    %325 = vmatprep.subr.mxu0 0.0
    %326 = vmatpush1.msra.mxu0 0.0
    %327 = vmatprep.mubr.f32.mxu0 0.0
    %328 = vmatmul.mubr.f32.gmra.mrb[0].mxu0 %v258
    %v329 = vpop.f32.mrb[0].mxu0
    %v330 = vadd.f32 0.0, %v329
    %v331 = vpop.f32.mrb[0].mxu0
    %332 = vdwg.mxu0
    %v333 = vadd.f32 %v262, %v330
    %v334 = vtanh.pop %v333
    %s335 = scalar_lea.vmem [#allocation10], 16
    %336 = vst [vmem:[%s335] sm:$0xff] %v334
    %s337 = scalar_lea.vmem [#allocation2], 24
    %v338 = vld [vmem:[%s337] sm:$0xff]
    %339 = vmatprep.subr.mxu0 0.0
    %340 = vmatpush1.msra.mxu0 %v79
    %341 = vmatprep.subr.mxu0 0.0
    %342 = vmatpush1.msra.mxu0 %v80
    %343 = vmatprep.subr.mxu0 0.0
    %344 = vmatpush1.msra.mxu0 %v81
    %345 = vmatprep.subr.mxu0 0.0
    %346 = vmatpush1.msra.mxu0 %v82
    %347 = vmatprep.subr.mxu0 0.0
    %348 = vmatpush1.msra.mxu0 %v83
    %349 = vmatprep.subr.mxu0 0.0
    %350 = vmatpush1.msra.mxu0 %v84
    %351 = vmatprep.subr.mxu0 0.0
    %352 = vmatpush1.msra.mxu0 %v85
    %353 = vmatprep.subr.mxu0 0.0
    %354 = vmatpush1.msra.mxu0 %v86
    %355 = vmatprep.subr.mxu0 0.0
    %356 = vmatpush1.msra.mxu0 %v87
    %357 = vmatprep.subr.mxu0 0.0
    %358 = vmatpush1.msra.mxu0 %v88
    %359 = vmatprep.subr.mxu0 0.0
    %360 = vmatpush1.msra.mxu0 %v89
    %361 = vmatprep.subr.mxu0 0.0
    %362 = vmatpush1.msra.mxu0 %v90
    %363 = vmatprep.subr.mxu0 0.0
    %364 = vmatpush1.msra.mxu0 %v91
    %365 = vmatprep.subr.mxu0 0.0
    %366 = vmatpush1.msra.mxu0 %v92
    %367 = vmatprep.subr.mxu0 0.0
    %368 = vmatpush1.msra.mxu0 %v93
    %369 = vmatprep.subr.mxu0 0.0
    %370 = vmatpush1.msra.mxu0 %v94
    %371 = vmatprep.subr.mxu0 0.0
    %372 = vmatpush1.msra.mxu0 0.0
    %373 = vmatprep.subr.mxu0 0.0
    %374 = vmatpush1.msra.mxu0 0.0
    %375 = vmatprep.subr.mxu0 0.0
    %376 = vmatpush1.msra.mxu0 0.0
    %377 = vmatprep.subr.mxu0 0.0
    %378 = vmatpush1.msra.mxu0 0.0
    %379 = vmatprep.subr.mxu0 0.0
    %380 = vmatpush1.msra.mxu0 0.0
    %381 = vmatprep.subr.mxu0 0.0
    %382 = vmatpush1.msra.mxu0 0.0
    %383 = vmatprep.subr.mxu0 0.0
    %384 = vmatpush1.msra.mxu0 0.0
    %385 = vmatprep.subr.mxu0 0.0
    %386 = vmatpush1.msra.mxu0 0.0
    %387 = vmatprep.subr.mxu0 0.0
    %388 = vmatpush1.msra.mxu0 0.0
    %389 = vmatprep.subr.mxu0 0.0
    %390 = vmatpush1.msra.mxu0 0.0
    %391 = vmatprep.subr.mxu0 0.0
    %392 = vmatpush1.msra.mxu0 0.0
    %393 = vmatprep.subr.mxu0 0.0
    %394 = vmatpush1.msra.mxu0 0.0
    %395 = vmatprep.subr.mxu0 0.0
    %396 = vmatpush1.msra.mxu0 0.0
    %397 = vmatprep.subr.mxu0 0.0
    %398 = vmatpush1.msra.mxu0 0.0
    %399 = vmatprep.subr.mxu0 0.0
    %400 = vmatpush1.msra.mxu0 0.0
    %401 = vmatprep.subr.mxu0 0.0
    %402 = vmatpush1.msra.mxu0 0.0
    %403 = vmatprep.mubr.f32.mxu0 0.0
    %404 = vmatmul.mubr.f32.gmra.mrb[0].mxu0 %v334
    %v405 = vpop.f32.mrb[0].mxu0
    %v406 = vadd.f32 0.0, %v405
    %v407 = vpop.f32.mrb[0].mxu0
    %408 = vdwg.mxu0
    %v409 = vadd.f32 %v338, %v406
    %v410 = vtanh.pop %v409
    %s411 = scalar_lea.vmem [#allocation10], 24
    %412 = vst [vmem:[%s411] sm:$0xff] %v410
    %s413 = scalar_lea.vmem [#allocation2], 32
    %v414 = vld [vmem:[%s413] sm:$0xff]
    %415 = vmatprep.subr.mxu0 0.0
    %416 = vmatpush1.msra.mxu0 %v79
    %417 = vmatprep.subr.mxu0 0.0
    %418 = vmatpush1.msra.mxu0 %v80
    %419 = vmatprep.subr.mxu0 0.0
    %420 = vmatpush1.msra.mxu0 %v81
    %421 = vmatprep.subr.mxu0 0.0
    %422 = vmatpush1.msra.mxu0 %v82
    %423 = vmatprep.subr.mxu0 0.0
    %424 = vmatpush1.msra.mxu0 %v83
    %425 = vmatprep.subr.mxu0 0.0
    %426 = vmatpush1.msra.mxu0 %v84
    %427 = vmatprep.subr.mxu0 0.0
    %428 = vmatpush1.msra.mxu0 %v85
    %429 = vmatprep.subr.mxu0 0.0
    %430 = vmatpush1.msra.mxu0 %v86
    %431 = vmatprep.subr.mxu0 0.0
    %432 = vmatpush1.msra.mxu0 %v87
    %433 = vmatprep.subr.mxu0 0.0
    %434 = vmatpush1.msra.mxu0 %v88
    %435 = vmatprep.subr.mxu0 0.0
    %436 = vmatpush1.msra.mxu0 %v89
    %437 = vmatprep.subr.mxu0 0.0
    %438 = vmatpush1.msra.mxu0 %v90
    %439 = vmatprep.subr.mxu0 0.0
    %440 = vmatpush1.msra.mxu0 %v91
    %441 = vmatprep.subr.mxu0 0.0
    %442 = vmatpush1.msra.mxu0 %v92
    %443 = vmatprep.subr.mxu0 0.0
    %444 = vmatpush1.msra.mxu0 %v93
    %445 = vmatprep.subr.mxu0 0.0
    %446 = vmatpush1.msra.mxu0 %v94
    %447 = vmatprep.subr.mxu0 0.0
    %448 = vmatpush1.msra.mxu0 0.0
    %449 = vmatprep.subr.mxu0 0.0
    %450 = vmatpush1.msra.mxu0 0.0
    %451 = vmatprep.subr.mxu0 0.0
    %452 = vmatpush1.msra.mxu0 0.0
    %453 = vmatprep.subr.mxu0 0.0
    %454 = vmatpush1.msra.mxu0 0.0
    %455 = vmatprep.subr.mxu0 0.0
    %456 = vmatpush1.msra.mxu0 0.0
    %457 = vmatprep.subr.mxu0 0.0
    %458 = vmatpush1.msra.mxu0 0.0
    %459 = vmatprep.subr.mxu0 0.0
    %460 = vmatpush1.msra.mxu0 0.0
    %461 = vmatprep.subr.mxu0 0.0
    %462 = vmatpush1.msra.mxu0 0.0
    %463 = vmatprep.subr.mxu0 0.0
    %464 = vmatpush1.msra.mxu0 0.0
    %465 = vmatprep.subr.mxu0 0.0
    %466 = vmatpush1.msra.mxu0 0.0
    %467 = vmatprep.subr.mxu0 0.0
    %468 = vmatpush1.msra.mxu0 0.0
    %469 = vmatprep.subr.mxu0 0.0
    %470 = vmatpush1.msra.mxu0 0.0
    %471 = vmatprep.subr.mxu0 0.0
    %472 = vmatpush1.msra.mxu0 0.0
    %473 = vmatprep.subr.mxu0 0.0
    %474 = vmatpush1.msra.mxu0 0.0
    %475 = vmatprep.subr.mxu0 0.0
    %476 = vmatpush1.msra.mxu0 0.0
    %477 = vmatprep.subr.mxu0 0.0
    %478 = vmatpush1.msra.mxu0 0.0
    %479 = vmatprep.mubr.f32.mxu0 0.0
    %480 = vmatmul.mubr.f32.gmra.mrb[0].mxu0 %v410
    %v481 = vpop.f32.mrb[0].mxu0
    %v482 = vadd.f32 0.0, %v481
    %v483 = vpop.f32.mrb[0].mxu0
    %484 = vdwg.mxu0
    %v485 = vadd.f32 %v414, %v482
    %v486 = vtanh.pop %v485
    %s487 = scalar_lea.vmem [#allocation10], 32
    %488 = vst [vmem:[%s487] sm:$0xff] %v486
    %s489 = scalar_lea.vmem [#allocation2], 40
    %v490 = vld [vmem:[%s489] sm:$0xff]
    %491 = vmatprep.subr.mxu0 0.0
    %492 = vmatpush1.msra.mxu0 %v79
    %493 = vmatprep.subr.mxu0 0.0
    %494 = vmatpush1.msra.mxu0 %v80
    %495 = vmatprep.subr.mxu0 0.0
    %496 = vmatpush1.msra.mxu0 %v81
    %497 = vmatprep.subr.mxu0 0.0
    %498 = vmatpush1.msra.mxu0 %v82
    %499 = vmatprep.subr.mxu0 0.0
    %500 = vmatpush1.msra.mxu0 %v83
    %501 = vmatprep.subr.mxu0 0.0
    %502 = vmatpush1.msra.mxu0 %v84
    %503 = vmatprep.subr.mxu0 0.0
    %504 = vmatpush1.msra.mxu0 %v85
    %505 = vmatprep.subr.mxu0 0.0
    %506 = vmatpush1.msra.mxu0 %v86
    %507 = vmatprep.subr.mxu0 0.0
    %508 = vmatpush1.msra.mxu0 %v87
    %509 = vmatprep.subr.mxu0 0.0
    %510 = vmatpush1.msra.mxu0 %v88
    %511 = vmatprep.subr.mxu0 0.0
    %512 = vmatpush1.msra.mxu0 %v89
    %513 = vmatprep.subr.mxu0 0.0
    %514 = vmatpush1.msra.mxu0 %v90
    %515 = vmatprep.subr.mxu0 0.0
    %516 = vmatpush1.msra.mxu0 %v91
    %517 = vmatprep.subr.mxu0 0.0
    %518 = vmatpush1.msra.mxu0 %v92
    %519 = vmatprep.subr.mxu0 0.0
    %520 = vmatpush1.msra.mxu0 %v93
    %521 = vmatprep.subr.mxu0 0.0
    %522 = vmatpush1.msra.mxu0 %v94
    %523 = vmatprep.subr.mxu0 0.0
    %524 = vmatpush1.msra.mxu0 0.0
    %525 = vmatprep.subr.mxu0 0.0
    %526 = vmatpush1.msra.mxu0 0.0
    %527 = vmatprep.subr.mxu0 0.0
    %528 = vmatpush1.msra.mxu0 0.0
    %529 = vmatprep.subr.mxu0 0.0
    %530 = vmatpush1.msra.mxu0 0.0
    %531 = vmatprep.subr.mxu0 0.0
    %532 = vmatpush1.msra.mxu0 0.0
    %533 = vmatprep.subr.mxu0 0.0
    %534 = vmatpush1.msra.mxu0 0.0
    %535 = vmatprep.subr.mxu0 0.0
    %536 = vmatpush1.msra.mxu0 0.0
    %537 = vmatprep.subr.mxu0 0.0
    %538 = vmatpush1.msra.mxu0 0.0
    %539 = vmatprep.subr.mxu0 0.0
    %540 = vmatpush1.msra.mxu0 0.0
    %541 = vmatprep.subr.mxu0 0.0
    %542 = vmatpush1.msra.mxu0 0.0
    %543 = vmatprep.subr.mxu0 0.0
    %544 = vmatpush1.msra.mxu0 0.0
    %545 = vmatprep.subr.mxu0 0.0
    %546 = vmatpush1.msra.mxu0 0.0
    %547 = vmatprep.subr.mxu0 0.0
    %548 = vmatpush1.msra.mxu0 0.0
    %549 = vmatprep.subr.mxu0 0.0
    %550 = vmatpush1.msra.mxu0 0.0
    %551 = vmatprep.subr.mxu0 0.0
    %552 = vmatpush1.msra.mxu0 0.0
    %553 = vmatprep.subr.mxu0 0.0
    %554 = vmatpush1.msra.mxu0 0.0
    %555 = vmatprep.mubr.f32.mxu0 0.0
    %556 = vmatmul.mubr.f32.gmra.mrb[0].mxu0 %v486
    %v557 = vpop.f32.mrb[0].mxu0
    %v558 = vadd.f32 0.0, %v557
    %v559 = vpop.f32.mrb[0].mxu0
    %560 = vdwg.mxu0
    %v561 = vadd.f32 %v490, %v558
    %v562 = vtanh.pop %v561
    %s563 = scalar_lea.vmem [#allocation10], 40
    %564 = vst [vmem:[%s563] sm:$0xff] %v562
    %s565 = scalar_lea.vmem [#allocation2], 48
    %v566 = vld [vmem:[%s565] sm:$0xff]
    %567 = vmatprep.subr.mxu0 0.0
    %568 = vmatpush1.msra.mxu0 %v79
    %569 = vmatprep.subr.mxu0 0.0
    %570 = vmatpush1.msra.mxu0 %v80
    %571 = vmatprep.subr.mxu0 0.0
    %572 = vmatpush1.msra.mxu0 %v81
    %573 = vmatprep.subr.mxu0 0.0
    %574 = vmatpush1.msra.mxu0 %v82
    %575 = vmatprep.subr.mxu0 0.0
    %576 = vmatpush1.msra.mxu0 %v83
    %577 = vmatprep.subr.mxu0 0.0
    %578 = vmatpush1.msra.mxu0 %v84
    %579 = vmatprep.subr.mxu0 0.0
    %580 = vmatpush1.msra.mxu0 %v85
    %581 = vmatprep.subr.mxu0 0.0
    %582 = vmatpush1.msra.mxu0 %v86
    %583 = vmatprep.subr.mxu0 0.0
    %584 = vmatpush1.msra.mxu0 %v87
    %585 = vmatprep.subr.mxu0 0.0
    %586 = vmatpush1.msra.mxu0 %v88
    %587 = vmatprep.subr.mxu0 0.0
    %588 = vmatpush1.msra.mxu0 %v89
    %589 = vmatprep.subr.mxu0 0.0
    %590 = vmatpush1.msra.mxu0 %v90
    %591 = vmatprep.subr.mxu0 0.0
    %592 = vmatpush1.msra.mxu0 %v91
    %593 = vmatprep.subr.mxu0 0.0
    %594 = vmatpush1.msra.mxu0 %v92
    %595 = vmatprep.subr.mxu0 0.0
    %596 = vmatpush1.msra.mxu0 %v93
    %597 = vmatprep.subr.mxu0 0.0
    %598 = vmatpush1.msra.mxu0 %v94
    %599 = vmatprep.subr.mxu0 0.0
    %600 = vmatpush1.msra.mxu0 0.0
    %601 = vmatprep.subr.mxu0 0.0
    %602 = vmatpush1.msra.mxu0 0.0
    %603 = vmatprep.subr.mxu0 0.0
    %604 = vmatpush1.msra.mxu0 0.0
    %605 = vmatprep.subr.mxu0 0.0
    %606 = vmatpush1.msra.mxu0 0.0
    %607 = vmatprep.subr.mxu0 0.0
    %608 = vmatpush1.msra.mxu0 0.0
    %609 = vmatprep.subr.mxu0 0.0
    %610 = vmatpush1.msra.mxu0 0.0
    %611 = vmatprep.subr.mxu0 0.0
    %612 = vmatpush1.msra.mxu0 0.0
    %613 = vmatprep.subr.mxu0 0.0
    %614 = vmatpush1.msra.mxu0 0.0
    %615 = vmatprep.subr.mxu0 0.0
    %616 = vmatpush1.msra.mxu0 0.0
    %617 = vmatprep.subr.mxu0 0.0
    %618 = vmatpush1.msra.mxu0 0.0
    %619 = vmatprep.subr.mxu0 0.0
    %620 = vmatpush1.msra.mxu0 0.0
    %621 = vmatprep.subr.mxu0 0.0
    %622 = vmatpush1.msra.mxu0 0.0
    %623 = vmatprep.subr.mxu0 0.0
    %624 = vmatpush1.msra.mxu0 0.0
    %625 = vmatprep.subr.mxu0 0.0
    %626 = vmatpush1.msra.mxu0 0.0
    %627 = vmatprep.subr.mxu0 0.0
    %628 = vmatpush1.msra.mxu0 0.0
    %629 = vmatprep.subr.mxu0 0.0
    %630 = vmatpush1.msra.mxu0 0.0
    %631 = vmatprep.mubr.f32.mxu0 0.0
    %632 = vmatmul.mubr.f32.gmra.mrb[0].mxu0 %v562
    %v633 = vpop.f32.mrb[0].mxu0
    %v634 = vadd.f32 0.0, %v633
    %v635 = vpop.f32.mrb[0].mxu0
    %636 = vdwg.mxu0
    %v637 = vadd.f32 %v566, %v634
    %v638 = vtanh.pop %v637
    %s639 = scalar_lea.vmem [#allocation10], 48
    %640 = vst [vmem:[%s639] sm:$0xff] %v638
    %s641 = scalar_lea.vmem [#allocation2], 56
    %v642 = vld [vmem:[%s641] sm:$0xff]
    %643 = vmatprep.subr.mxu0 0.0
    %644 = vmatpush1.msra.mxu0 %v79
    %645 = vmatprep.subr.mxu0 0.0
    %646 = vmatpush1.msra.mxu0 %v80
    %647 = vmatprep.subr.mxu0 0.0
    %648 = vmatpush1.msra.mxu0 %v81
    %649 = vmatprep.subr.mxu0 0.0
    %650 = vmatpush1.msra.mxu0 %v82
    %651 = vmatprep.subr.mxu0 0.0
    %652 = vmatpush1.msra.mxu0 %v83
    %653 = vmatprep.subr.mxu0 0.0
    %654 = vmatpush1.msra.mxu0 %v84
    %655 = vmatprep.subr.mxu0 0.0
    %656 = vmatpush1.msra.mxu0 %v85
    %657 = vmatprep.subr.mxu0 0.0
    %658 = vmatpush1.msra.mxu0 %v86
    %659 = vmatprep.subr.mxu0 0.0
    %660 = vmatpush1.msra.mxu0 %v87
    %661 = vmatprep.subr.mxu0 0.0
    %662 = vmatpush1.msra.mxu0 %v88
    %663 = vmatprep.subr.mxu0 0.0
    %664 = vmatpush1.msra.mxu0 %v89
    %665 = vmatprep.subr.mxu0 0.0
    %666 = vmatpush1.msra.mxu0 %v90
    %667 = vmatprep.subr.mxu0 0.0
    %668 = vmatpush1.msra.mxu0 %v91
    %669 = vmatprep.subr.mxu0 0.0
    %670 = vmatpush1.msra.mxu0 %v92
    %671 = vmatprep.subr.mxu0 0.0
    %672 = vmatpush1.msra.mxu0 %v93
    %673 = vmatprep.subr.mxu0 0.0
    %674 = vmatpush1.msra.mxu0 %v94
    %675 = vmatprep.subr.mxu0 0.0
    %676 = vmatpush1.msra.mxu0 0.0
    %677 = vmatprep.subr.mxu0 0.0
    %678 = vmatpush1.msra.mxu0 0.0
    %679 = vmatprep.subr.mxu0 0.0
    %680 = vmatpush1.msra.mxu0 0.0
    %681 = vmatprep.subr.mxu0 0.0
    %682 = vmatpush1.msra.mxu0 0.0
    %683 = vmatprep.subr.mxu0 0.0
    %684 = vmatpush1.msra.mxu0 0.0
    %685 = vmatprep.subr.mxu0 0.0
    %686 = vmatpush1.msra.mxu0 0.0
    %687 = vmatprep.subr.mxu0 0.0
    %688 = vmatpush1.msra.mxu0 0.0
    %689 = vmatprep.subr.mxu0 0.0
    %690 = vmatpush1.msra.mxu0 0.0
    %691 = vmatprep.subr.mxu0 0.0
    %692 = vmatpush1.msra.mxu0 0.0
    %693 = vmatprep.subr.mxu0 0.0
    %694 = vmatpush1.msra.mxu0 0.0
    %695 = vmatprep.subr.mxu0 0.0
    %696 = vmatpush1.msra.mxu0 0.0
    %697 = vmatprep.subr.mxu0 0.0
    %698 = vmatpush1.msra.mxu0 0.0
    %699 = vmatprep.subr.mxu0 0.0
    %700 = vmatpush1.msra.mxu0 0.0
    %701 = vmatprep.subr.mxu0 0.0
    %702 = vmatpush1.msra.mxu0 0.0
    %703 = vmatprep.subr.mxu0 0.0
    %704 = vmatpush1.msra.mxu0 0.0
    %705 = vmatprep.subr.mxu0 0.0
    %706 = vmatpush1.msra.mxu0 0.0
    %707 = vmatprep.mubr.f32.mxu0 0.0
    %708 = vmatmul.mubr.f32.gmra.mrb[0].mxu0 %v638
    %v709 = vpop.f32.mrb[0].mxu0
    %v710 = vadd.f32 0.0, %v709
    %v711 = vpop.f32.mrb[0].mxu0
    %712 = vdwg.mxu0
    %v713 = vadd.f32 %v642, %v710
    %v714 = vtanh.pop %v713
    %s715 = scalar_lea.vmem [#allocation10], 56
    %716 = vst [vmem:[%s715] sm:$0xff] %v714
    %v717 = vld [vmem:[#allocation10] sm:$0xff]
    %v718 = vld [vmem:[#allocation10 + $0x8] sm:$0xff]
    %v719 = vld [vmem:[#allocation10 + $0x10] sm:$0xff]
    %v720 = vld [vmem:[#allocation10 + $0x18] sm:$0xff]
    %v721 = vld [vmem:[#allocation10 + $0x20] sm:$0xff]
    %v722 = vld [vmem:[#allocation10 + $0x28] sm:$0xff]
    %v723 = vld [vmem:[#allocation10 + $0x30] sm:$0xff]
    %v724 = vld [vmem:[#allocation10 + $0x38] sm:$0xff]
    %v725 = vld [vmem:[#allocation7] sm:$0xff]
    %v726 = vld [vmem:[#allocation7 + $0x8] sm:$0xff]
    %v727 = vld [vmem:[#allocation7 + $0x10] sm:$0xff]
    %v728 = vld [vmem:[#allocation7 + $0x18] sm:$0xff]
    %v729 = vld [vmem:[#allocation7 + $0x20] sm:$0xff]
    %v730 = vld [vmem:[#allocation7 + $0x28] sm:$0xff]
    %v731 = vld [vmem:[#allocation7 + $0x30] sm:$0xff]
    %v732 = vld [vmem:[#allocation7 + $0x38] sm:$0xff]
    %v733 = vld [vmem:[#allocation7 + $0x40] sm:$0xff]
    %v734 = vld [vmem:[#allocation7 + $0x48] sm:$0xff]
    %v735 = vld [vmem:[#allocation7 + $0x50] sm:$0xff]
    %v736 = vld [vmem:[#allocation7 + $0x58] sm:$0xff]
    %v737 = vld [vmem:[#allocation7 + $0x60] sm:$0xff]
    %v738 = vld [vmem:[#allocation7 + $0x68] sm:$0xff]
    %v739 = vld [vmem:[#allocation7 + $0x70] sm:$0xff]
    %v740 = vld [vmem:[#allocation7 + $0x78] sm:$0xff]
    %v741 = vld [vmem:[%s3] sm:$0x1]
    %v743 = vlaneseq
    %v744 = vshrl.u32 %v743, 7
    %v745 = vsub.s32 0, %v744
    %v746 = vrot.slane %v741, %v745
    %748 = vmatprep.subr.mxu0 0.0
    %749 = vmatpush1.msra.mxu0 %v725
    %750 = vmatprep.subr.mxu0 0.0
    %751 = vmatpush1.msra.mxu0 %v726
    %752 = vmatprep.subr.mxu0 0.0
    %753 = vmatpush1.msra.mxu0 %v727
    %754 = vmatprep.subr.mxu0 0.0
    %755 = vmatpush1.msra.mxu0 %v728
    %756 = vmatprep.subr.mxu0 0.0
    %757 = vmatpush1.msra.mxu0 %v729
    %758 = vmatprep.subr.mxu0 0.0
    %759 = vmatpush1.msra.mxu0 %v730
    %760 = vmatprep.subr.mxu0 0.0
    %761 = vmatpush1.msra.mxu0 %v731
    %762 = vmatprep.subr.mxu0 0.0
    %763 = vmatpush1.msra.mxu0 %v732
    %764 = vmatprep.subr.mxu0 0.0
    %765 = vmatpush1.msra.mxu0 %v733
    %766 = vmatprep.subr.mxu0 0.0
    %767 = vmatpush1.msra.mxu0 %v734
    %768 = vmatprep.subr.mxu0 0.0
    %769 = vmatpush1.msra.mxu0 %v735
    %770 = vmatprep.subr.mxu0 0.0
    %771 = vmatpush1.msra.mxu0 %v736
    %772 = vmatprep.subr.mxu0 0.0
    %773 = vmatpush1.msra.mxu0 %v737
    %774 = vmatprep.subr.mxu0 0.0
    %775 = vmatpush1.msra.mxu0 %v738
    %776 = vmatprep.subr.mxu0 0.0
    %777 = vmatpush1.msra.mxu0 %v739
    %778 = vmatprep.subr.mxu0 0.0
    %779 = vmatpush1.msra.mxu0 %v740
    %780 = vmatprep.subr.mxu0 0.0
    %781 = vmatpush1.msra.mxu0 0.0
    %782 = vmatprep.subr.mxu0 0.0
    %783 = vmatpush1.msra.mxu0 0.0
    %784 = vmatprep.subr.mxu0 0.0
    %785 = vmatpush1.msra.mxu0 0.0
    %786 = vmatprep.subr.mxu0 0.0
    %787 = vmatpush1.msra.mxu0 0.0
    %788 = vmatprep.subr.mxu0 0.0
    %789 = vmatpush1.msra.mxu0 0.0
    %790 = vmatprep.subr.mxu0 0.0
    %791 = vmatpush1.msra.mxu0 0.0
    %792 = vmatprep.subr.mxu0 0.0
    %793 = vmatpush1.msra.mxu0 0.0
    %794 = vmatprep.subr.mxu0 0.0
    %795 = vmatpush1.msra.mxu0 0.0
    %796 = vmatprep.subr.mxu0 0.0
    %797 = vmatpush1.msra.mxu0 0.0
    %798 = vmatprep.subr.mxu0 0.0
    %799 = vmatpush1.msra.mxu0 0.0
    %800 = vmatprep.subr.mxu0 0.0
    %801 = vmatpush1.msra.mxu0 0.0
    %802 = vmatprep.subr.mxu0 0.0
    %803 = vmatpush1.msra.mxu0 0.0
    %804 = vmatprep.subr.mxu0 0.0
    %805 = vmatpush1.msra.mxu0 0.0
    %806 = vmatprep.subr.mxu0 0.0
    %807 = vmatpush1.msra.mxu0 0.0
    %808 = vmatprep.subr.mxu0 0.0
    %809 = vmatpush1.msra.mxu0 0.0
    %810 = vmatprep.subr.mxu0 0.0
    %811 = vmatpush1.msra.mxu0 0.0
    %812 = vmatprep.mubr.f32.mxu0 0.0
    %813 = vmatmul.mubr.f32.gmra.mrb[0].mxu0 %v717
    %v814 = vpop.f32.mrb[0].mxu0
    %v815 = vadd.f32 %v746, %v814
    %v816 = vpop.f32.mrb[0].mxu0
    %817 = vmatprep.mubr.f32.mxu0 0.0
    %818 = vmatmul.mubr.f32.gmra.mrb[0].mxu0 %v718
    %v819 = vpop.f32.mrb[0].mxu0
    %v820 = vadd.f32 %v746, %v819
    %v821 = vpop.f32.mrb[0].mxu0
    %822 = vmatprep.mubr.f32.mxu0 0.0
    %823 = vmatmul.mubr.f32.gmra.mrb[0].mxu0 %v719
    %v824 = vpop.f32.mrb[0].mxu0
    %v825 = vadd.f32 %v746, %v824
    %v826 = vpop.f32.mrb[0].mxu0
    %827 = vmatprep.mubr.f32.mxu0 0.0
    %828 = vmatmul.mubr.f32.gmra.mrb[0].mxu0 %v720
    %v829 = vpop.f32.mrb[0].mxu0
    %v830 = vadd.f32 %v746, %v829
    %v831 = vpop.f32.mrb[0].mxu0
    %832 = vmatprep.mubr.f32.mxu0 0.0
    %833 = vmatmul.mubr.f32.gmra.mrb[0].mxu0 %v721
    %v834 = vpop.f32.mrb[0].mxu0
    %v835 = vadd.f32 %v746, %v834
    %v836 = vpop.f32.mrb[0].mxu0
    %837 = vmatprep.mubr.f32.mxu0 0.0
    %838 = vmatmul.mubr.f32.gmra.mrb[0].mxu0 %v722
    %v839 = vpop.f32.mrb[0].mxu0
    %v840 = vadd.f32 %v746, %v839
    %v841 = vpop.f32.mrb[0].mxu0
    %842 = vmatprep.mubr.f32.mxu0 0.0
    %843 = vmatmul.mubr.f32.gmra.mrb[0].mxu0 %v723
    %v844 = vpop.f32.mrb[0].mxu0
    %v845 = vadd.f32 %v746, %v844
    %v846 = vpop.f32.mrb[0].mxu0
    %847 = vmatprep.mubr.f32.mxu0 0.0
    %848 = vmatmul.mubr.f32.gmra.mrb[0].mxu0 %v724
    %v849 = vpop.f32.mrb[0].mxu0
    %v850 = vadd.f32 %v746, %v849
    %v851 = vpop.f32.mrb[0].mxu0
    %852 = vdwg.mxu0
    %853 = vst [vmem:[#allocation10] sm:$0xff] %v815
    %854 = vst [vmem:[#allocation10 + $0x8] sm:$0xff] %v820
    %855 = vst [vmem:[#allocation10 + $0x10] sm:$0xff] %v825
    %856 = vst [vmem:[#allocation10 + $0x18] sm:$0xff] %v830
    %857 = vst [vmem:[#allocation10 + $0x20] sm:$0xff] %v835
    %858 = vst [vmem:[#allocation10 + $0x28] sm:$0xff] %v840
    %859 = vst [vmem:[#allocation10 + $0x30] sm:$0xff] %v845
    %860 = vst [vmem:[#allocation10 + $0x38] sm:$0xff] %v850
    %v861 = vld [vmem:[#allocation10] sm:$0xff]
    %862 = vmatprep.subr.mxu0 0.0
    %863 = vmatpush1.msra.mxu0 %v95
    %864 = vmatprep.subr.mxu0 0.0
    %865 = vmatpush1.msra.mxu0 %v96
    %866 = vmatprep.subr.mxu0 0.0
    %867 = vmatpush1.msra.mxu0 %v97
    %868 = vmatprep.subr.mxu0 0.0
    %869 = vmatpush1.msra.mxu0 %v98
    %870 = vmatprep.subr.mxu0 0.0
    %871 = vmatpush1.msra.mxu0 %v99
    %872 = vmatprep.subr.mxu0 0.0
    %873 = vmatpush1.msra.mxu0 %v100
    %874 = vmatprep.subr.mxu0 0.0
    %875 = vmatpush1.msra.mxu0 %v101
    %876 = vmatprep.subr.mxu0 0.0
    %877 = vmatpush1.msra.mxu0 %v102
    %878 = vmatprep.subr.mxu0 0.0
    %879 = vmatpush1.msra.mxu0 %v103
    %880 = vmatprep.subr.mxu0 0.0
    %881 = vmatpush1.msra.mxu0 %v104
    %882 = vmatprep.subr.mxu0 0.0
    %883 = vmatpush1.msra.mxu0 %v105
    %884 = vmatprep.subr.mxu0 0.0
    %885 = vmatpush1.msra.mxu0 %v106
    %886 = vmatprep.subr.mxu0 0.0
    %887 = vmatpush1.msra.mxu0 %v107
    %888 = vmatprep.subr.mxu0 0.0
    %889 = vmatpush1.msra.mxu0 %v108
    %890 = vmatprep.subr.mxu0 0.0
    %891 = vmatpush1.msra.mxu0 %v109
    %892 = vmatprep.subr.mxu0 0.0
    %893 = vmatpush1.msra.mxu0 %v110
    %894 = vmatprep.subr.mxu0 0.0
    %895 = vmatpush1.msra.mxu0 0.0
    %896 = vmatprep.subr.mxu0 0.0
    %897 = vmatpush1.msra.mxu0 0.0
    %898 = vmatprep.subr.mxu0 0.0
    %899 = vmatpush1.msra.mxu0 0.0
    %900 = vmatprep.subr.mxu0 0.0
    %901 = vmatpush1.msra.mxu0 0.0
    %902 = vmatprep.subr.mxu0 0.0
    %903 = vmatpush1.msra.mxu0 0.0
    %904 = vmatprep.subr.mxu0 0.0
    %905 = vmatpush1.msra.mxu0 0.0
    %906 = vmatprep.subr.mxu0 0.0
    %907 = vmatpush1.msra.mxu0 0.0
    %908 = vmatprep.subr.mxu0 0.0
    %909 = vmatpush1.msra.mxu0 0.0
    %910 = vmatprep.subr.mxu0 0.0
    %911 = vmatpush1.msra.mxu0 0.0
    %912 = vmatprep.subr.mxu0 0.0
    %913 = vmatpush1.msra.mxu0 0.0
    %914 = vmatprep.subr.mxu0 0.0
    %915 = vmatpush1.msra.mxu0 0.0
    %916 = vmatprep.subr.mxu0 0.0
    %917 = vmatpush1.msra.mxu0 0.0
    %918 = vmatprep.subr.mxu0 0.0
    %919 = vmatpush1.msra.mxu0 0.0
    %920 = vmatprep.subr.mxu0 0.0
    %921 = vmatpush1.msra.mxu0 0.0
    %922 = vmatprep.subr.mxu0 0.0
    %923 = vmatpush1.msra.mxu0 0.0
    %924 = vmatprep.subr.mxu0 0.0
    %925 = vmatpush1.msra.mxu0 0.0
    %926 = vmatprep.mubr.f32.mxu0 0.0
    %927 = vmatmul.mubr.f32.gmra.mrb[0].mxu0 0.0
    %v928 = vpop.f32.mrb[0].mxu0
    %v929 = vadd.f32 0.0, %v928
    %v930 = vpop.f32.mrb[0].mxu0
    %931 = vdwg.mxu0
    %v932 = vadd.f32 %v861, %v929
    %v933 = vtanh.pop %v932
    %934 = vst [vmem:[#allocation10] sm:$0xff] %v933
    %v935 = vld [vmem:[%s259] sm:$0xff]
    %936 = vmatprep.subr.mxu0 0.0
    %937 = vmatpush1.msra.mxu0 %v95
    %938 = vmatprep.subr.mxu0 0.0
    %939 = vmatpush1.msra.mxu0 %v96
    %940 = vmatprep.subr.mxu0 0.0
    %941 = vmatpush1.msra.mxu0 %v97
    %942 = vmatprep.subr.mxu0 0.0
    %943 = vmatpush1.msra.mxu0 %v98
    %944 = vmatprep.subr.mxu0 0.0
    %945 = vmatpush1.msra.mxu0 %v99
    %946 = vmatprep.subr.mxu0 0.0
    %947 = vmatpush1.msra.mxu0 %v100
    %948 = vmatprep.subr.mxu0 0.0
    %949 = vmatpush1.msra.mxu0 %v101
    %950 = vmatprep.subr.mxu0 0.0
    %951 = vmatpush1.msra.mxu0 %v102
    %952 = vmatprep.subr.mxu0 0.0
    %953 = vmatpush1.msra.mxu0 %v103
    %954 = vmatprep.subr.mxu0 0.0
    %955 = vmatpush1.msra.mxu0 %v104
    %956 = vmatprep.subr.mxu0 0.0
    %957 = vmatpush1.msra.mxu0 %v105
    %958 = vmatprep.subr.mxu0 0.0
    %959 = vmatpush1.msra.mxu0 %v106
    %960 = vmatprep.subr.mxu0 0.0
    %961 = vmatpush1.msra.mxu0 %v107
    %962 = vmatprep.subr.mxu0 0.0
    %963 = vmatpush1.msra.mxu0 %v108
    %964 = vmatprep.subr.mxu0 0.0
    %965 = vmatpush1.msra.mxu0 %v109
    %966 = vmatprep.subr.mxu0 0.0
    %967 = vmatpush1.msra.mxu0 %v110
    %968 = vmatprep.subr.mxu0 0.0
    %969 = vmatpush1.msra.mxu0 0.0
    %970 = vmatprep.subr.mxu0 0.0
    %971 = vmatpush1.msra.mxu0 0.0
    %972 = vmatprep.subr.mxu0 0.0
    %973 = vmatpush1.msra.mxu0 0.0
    %974 = vmatprep.subr.mxu0 0.0
    %975 = vmatpush1.msra.mxu0 0.0
    %976 = vmatprep.subr.mxu0 0.0
    %977 = vmatpush1.msra.mxu0 0.0
    %978 = vmatprep.subr.mxu0 0.0
    %979 = vmatpush1.msra.mxu0 0.0
    %980 = vmatprep.subr.mxu0 0.0
    %981 = vmatpush1.msra.mxu0 0.0
    %982 = vmatprep.subr.mxu0 0.0
    %983 = vmatpush1.msra.mxu0 0.0
    %984 = vmatprep.subr.mxu0 0.0
    %985 = vmatpush1.msra.mxu0 0.0
    %986 = vmatprep.subr.mxu0 0.0
    %987 = vmatpush1.msra.mxu0 0.0
    %988 = vmatprep.subr.mxu0 0.0
    %989 = vmatpush1.msra.mxu0 0.0
    %990 = vmatprep.subr.mxu0 0.0
    %991 = vmatpush1.msra.mxu0 0.0
    %992 = vmatprep.subr.mxu0 0.0
    %993 = vmatpush1.msra.mxu0 0.0
    %994 = vmatprep.subr.mxu0 0.0
    %995 = vmatpush1.msra.mxu0 0.0
    %996 = vmatprep.subr.mxu0 0.0
    %997 = vmatpush1.msra.mxu0 0.0
    %998 = vmatprep.subr.mxu0 0.0
    %999 = vmatpush1.msra.mxu0 0.0
    %1000 = vmatprep.mubr.f32.mxu0 0.0
    %1001 = vmatmul.mubr.f32.gmra.mrb[0].mxu0 %v933
    %v1002 = vpop.f32.mrb[0].mxu0
    %v1003 = vadd.f32 0.0, %v1002
    %v1004 = vpop.f32.mrb[0].mxu0
    %1005 = vdwg.mxu0
    %v1006 = vadd.f32 %v935, %v1003
    %v1007 = vtanh.pop %v1006
    %1008 = vst [vmem:[%s259] sm:$0xff] %v1007
    %v1009 = vld [vmem:[%s335] sm:$0xff]
    %1010 = vmatprep.subr.mxu0 0.0
    %1011 = vmatpush1.msra.mxu0 %v95
    %1012 = vmatprep.subr.mxu0 0.0
    %1013 = vmatpush1.msra.mxu0 %v96
    %1014 = vmatprep.subr.mxu0 0.0
    %1015 = vmatpush1.msra.mxu0 %v97
    %1016 = vmatprep.subr.mxu0 0.0
    %1017 = vmatpush1.msra.mxu0 %v98
    %1018 = vmatprep.subr.mxu0 0.0
    %1019 = vmatpush1.msra.mxu0 %v99
    %1020 = vmatprep.subr.mxu0 0.0
    %1021 = vmatpush1.msra.mxu0 %v100
    %1022 = vmatprep.subr.mxu0 0.0
    %1023 = vmatpush1.msra.mxu0 %v101
    %1024 = vmatprep.subr.mxu0 0.0
    %1025 = vmatpush1.msra.mxu0 %v102
    %1026 = vmatprep.subr.mxu0 0.0
    %1027 = vmatpush1.msra.mxu0 %v103
    %1028 = vmatprep.subr.mxu0 0.0
    %1029 = vmatpush1.msra.mxu0 %v104
    %1030 = vmatprep.subr.mxu0 0.0
    %1031 = vmatpush1.msra.mxu0 %v105
    %1032 = vmatprep.subr.mxu0 0.0
    %1033 = vmatpush1.msra.mxu0 %v106
    %1034 = vmatprep.subr.mxu0 0.0
    %1035 = vmatpush1.msra.mxu0 %v107
    %1036 = vmatprep.subr.mxu0 0.0
    %1037 = vmatpush1.msra.mxu0 %v108
    %1038 = vmatprep.subr.mxu0 0.0
    %1039 = vmatpush1.msra.mxu0 %v109
    %1040 = vmatprep.subr.mxu0 0.0
    %1041 = vmatpush1.msra.mxu0 %v110
    %1042 = vmatprep.subr.mxu0 0.0
    %1043 = vmatpush1.msra.mxu0 0.0
    %1044 = vmatprep.subr.mxu0 0.0
    %1045 = vmatpush1.msra.mxu0 0.0
    %1046 = vmatprep.subr.mxu0 0.0
    %1047 = vmatpush1.msra.mxu0 0.0
    %1048 = vmatprep.subr.mxu0 0.0
    %1049 = vmatpush1.msra.mxu0 0.0
    %1050 = vmatprep.subr.mxu0 0.0
    %1051 = vmatpush1.msra.mxu0 0.0
    %1052 = vmatprep.subr.mxu0 0.0
    %1053 = vmatpush1.msra.mxu0 0.0
    %1054 = vmatprep.subr.mxu0 0.0
    %1055 = vmatpush1.msra.mxu0 0.0
    %1056 = vmatprep.subr.mxu0 0.0
    %1057 = vmatpush1.msra.mxu0 0.0
    %1058 = vmatprep.subr.mxu0 0.0
    %1059 = vmatpush1.msra.mxu0 0.0
    %1060 = vmatprep.subr.mxu0 0.0
    %1061 = vmatpush1.msra.mxu0 0.0
    %1062 = vmatprep.subr.mxu0 0.0
    %1063 = vmatpush1.msra.mxu0 0.0
    %1064 = vmatprep.subr.mxu0 0.0
    %1065 = vmatpush1.msra.mxu0 0.0
    %1066 = vmatprep.subr.mxu0 0.0
    %1067 = vmatpush1.msra.mxu0 0.0
    %1068 = vmatprep.subr.mxu0 0.0
    %1069 = vmatpush1.msra.mxu0 0.0
    %1070 = vmatprep.subr.mxu0 0.0
    %1071 = vmatpush1.msra.mxu0 0.0
    %1072 = vmatprep.subr.mxu0 0.0
    %1073 = vmatpush1.msra.mxu0 0.0
    %1074 = vmatprep.mubr.f32.mxu0 0.0
    %1075 = vmatmul.mubr.f32.gmra.mrb[0].mxu0 %v1007
    %v1076 = vpop.f32.mrb[0].mxu0
    %v1077 = vadd.f32 0.0, %v1076
    %v1078 = vpop.f32.mrb[0].mxu0
    %1079 = vdwg.mxu0
    %v1080 = vadd.f32 %v1009, %v1077
    %v1081 = vtanh.pop %v1080
    %1082 = vst [vmem:[%s335] sm:$0xff] %v1081
    %v1083 = vld [vmem:[%s411] sm:$0xff]
    %1084 = vmatprep.subr.mxu0 0.0
    %1085 = vmatpush1.msra.mxu0 %v95
    %1086 = vmatprep.subr.mxu0 0.0
    %1087 = vmatpush1.msra.mxu0 %v96
    %1088 = vmatprep.subr.mxu0 0.0
    %1089 = vmatpush1.msra.mxu0 %v97
    %1090 = vmatprep.subr.mxu0 0.0
    %1091 = vmatpush1.msra.mxu0 %v98
    %1092 = vmatprep.subr.mxu0 0.0
    %1093 = vmatpush1.msra.mxu0 %v99
    %1094 = vmatprep.subr.mxu0 0.0
    %1095 = vmatpush1.msra.mxu0 %v100
    %1096 = vmatprep.subr.mxu0 0.0
    %1097 = vmatpush1.msra.mxu0 %v101
    %1098 = vmatprep.subr.mxu0 0.0
    %1099 = vmatpush1.msra.mxu0 %v102
    %1100 = vmatprep.subr.mxu0 0.0
    %1101 = vmatpush1.msra.mxu0 %v103
    %1102 = vmatprep.subr.mxu0 0.0
    %1103 = vmatpush1.msra.mxu0 %v104
    %1104 = vmatprep.subr.mxu0 0.0
    %1105 = vmatpush1.msra.mxu0 %v105
    %1106 = vmatprep.subr.mxu0 0.0
    %1107 = vmatpush1.msra.mxu0 %v106
    %1108 = vmatprep.subr.mxu0 0.0
    %1109 = vmatpush1.msra.mxu0 %v107
    %1110 = vmatprep.subr.mxu0 0.0
    %1111 = vmatpush1.msra.mxu0 %v108
    %1112 = vmatprep.subr.mxu0 0.0
    %1113 = vmatpush1.msra.mxu0 %v109
    %1114 = vmatprep.subr.mxu0 0.0
    %1115 = vmatpush1.msra.mxu0 %v110
    %1116 = vmatprep.subr.mxu0 0.0
    %1117 = vmatpush1.msra.mxu0 0.0
    %1118 = vmatprep.subr.mxu0 0.0
    %1119 = vmatpush1.msra.mxu0 0.0
    %1120 = vmatprep.subr.mxu0 0.0
    %1121 = vmatpush1.msra.mxu0 0.0
    %1122 = vmatprep.subr.mxu0 0.0
    %1123 = vmatpush1.msra.mxu0 0.0
    %1124 = vmatprep.subr.mxu0 0.0
    %1125 = vmatpush1.msra.mxu0 0.0
    %1126 = vmatprep.subr.mxu0 0.0
    %1127 = vmatpush1.msra.mxu0 0.0
    %1128 = vmatprep.subr.mxu0 0.0
    %1129 = vmatpush1.msra.mxu0 0.0
    %1130 = vmatprep.subr.mxu0 0.0
    %1131 = vmatpush1.msra.mxu0 0.0
    %1132 = vmatprep.subr.mxu0 0.0
    %1133 = vmatpush1.msra.mxu0 0.0
    %1134 = vmatprep.subr.mxu0 0.0
    %1135 = vmatpush1.msra.mxu0 0.0
    %1136 = vmatprep.subr.mxu0 0.0
    %1137 = vmatpush1.msra.mxu0 0.0
    %1138 = vmatprep.subr.mxu0 0.0
    %1139 = vmatpush1.msra.mxu0 0.0
    %1140 = vmatprep.subr.mxu0 0.0
    %1141 = vmatpush1.msra.mxu0 0.0
    %1142 = vmatprep.subr.mxu0 0.0
    %1143 = vmatpush1.msra.mxu0 0.0
    %1144 = vmatprep.subr.mxu0 0.0
    %1145 = vmatpush1.msra.mxu0 0.0
    %1146 = vmatprep.subr.mxu0 0.0
    %1147 = vmatpush1.msra.mxu0 0.0
    %1148 = vmatprep.mubr.f32.mxu0 0.0
    %1149 = vmatmul.mubr.f32.gmra.mrb[0].mxu0 %v1081
    %v1150 = vpop.f32.mrb[0].mxu0
    %v1151 = vadd.f32 0.0, %v1150
    %v1152 = vpop.f32.mrb[0].mxu0
    %1153 = vdwg.mxu0
    %v1154 = vadd.f32 %v1083, %v1151
    %v1155 = vtanh.pop %v1154
    %1156 = vst [vmem:[%s411] sm:$0xff] %v1155
    %v1157 = vld [vmem:[%s487] sm:$0xff]
    %1158 = vmatprep.subr.mxu0 0.0
    %1159 = vmatpush1.msra.mxu0 %v95
    %1160 = vmatprep.subr.mxu0 0.0
    %1161 = vmatpush1.msra.mxu0 %v96
    %1162 = vmatprep.subr.mxu0 0.0
    %1163 = vmatpush1.msra.mxu0 %v97
    %1164 = vmatprep.subr.mxu0 0.0
    %1165 = vmatpush1.msra.mxu0 %v98
    %1166 = vmatprep.subr.mxu0 0.0
    %1167 = vmatpush1.msra.mxu0 %v99
    %1168 = vmatprep.subr.mxu0 0.0
    %1169 = vmatpush1.msra.mxu0 %v100
    %1170 = vmatprep.subr.mxu0 0.0
    %1171 = vmatpush1.msra.mxu0 %v101
    %1172 = vmatprep.subr.mxu0 0.0
    %1173 = vmatpush1.msra.mxu0 %v102
    %1174 = vmatprep.subr.mxu0 0.0
    %1175 = vmatpush1.msra.mxu0 %v103
    %1176 = vmatprep.subr.mxu0 0.0
    %1177 = vmatpush1.msra.mxu0 %v104
    %1178 = vmatprep.subr.mxu0 0.0
    %1179 = vmatpush1.msra.mxu0 %v105
    %1180 = vmatprep.subr.mxu0 0.0
    %1181 = vmatpush1.msra.mxu0 %v106
    %1182 = vmatprep.subr.mxu0 0.0
    %1183 = vmatpush1.msra.mxu0 %v107
    %1184 = vmatprep.subr.mxu0 0.0
    %1185 = vmatpush1.msra.mxu0 %v108
    %1186 = vmatprep.subr.mxu0 0.0
    %1187 = vmatpush1.msra.mxu0 %v109
    %1188 = vmatprep.subr.mxu0 0.0
    %1189 = vmatpush1.msra.mxu0 %v110
    %1190 = vmatprep.subr.mxu0 0.0
    %1191 = vmatpush1.msra.mxu0 0.0
    %1192 = vmatprep.subr.mxu0 0.0
    %1193 = vmatpush1.msra.mxu0 0.0
    %1194 = vmatprep.subr.mxu0 0.0
    %1195 = vmatpush1.msra.mxu0 0.0
    %1196 = vmatprep.subr.mxu0 0.0
    %1197 = vmatpush1.msra.mxu0 0.0
    %1198 = vmatprep.subr.mxu0 0.0
    %1199 = vmatpush1.msra.mxu0 0.0
    %1200 = vmatprep.subr.mxu0 0.0
    %1201 = vmatpush1.msra.mxu0 0.0
    %1202 = vmatprep.subr.mxu0 0.0
    %1203 = vmatpush1.msra.mxu0 0.0
    %1204 = vmatprep.subr.mxu0 0.0
    %1205 = vmatpush1.msra.mxu0 0.0
    %1206 = vmatprep.subr.mxu0 0.0
    %1207 = vmatpush1.msra.mxu0 0.0
    %1208 = vmatprep.subr.mxu0 0.0
    %1209 = vmatpush1.msra.mxu0 0.0
    %1210 = vmatprep.subr.mxu0 0.0
    %1211 = vmatpush1.msra.mxu0 0.0
    %1212 = vmatprep.subr.mxu0 0.0
    %1213 = vmatpush1.msra.mxu0 0.0
    %1214 = vmatprep.subr.mxu0 0.0
    %1215 = vmatpush1.msra.mxu0 0.0
    %1216 = vmatprep.subr.mxu0 0.0
    %1217 = vmatpush1.msra.mxu0 0.0
    %1218 = vmatprep.subr.mxu0 0.0
    %1219 = vmatpush1.msra.mxu0 0.0
    %1220 = vmatprep.subr.mxu0 0.0
    %1221 = vmatpush1.msra.mxu0 0.0
    %1222 = vmatprep.mubr.f32.mxu0 0.0
    %1223 = vmatmul.mubr.f32.gmra.mrb[0].mxu0 %v1155
    %v1224 = vpop.f32.mrb[0].mxu0
    %v1225 = vadd.f32 0.0, %v1224
    %v1226 = vpop.f32.mrb[0].mxu0
    %1227 = vdwg.mxu0
    %v1228 = vadd.f32 %v1157, %v1225
    %v1229 = vtanh.pop %v1228
    %1230 = vst [vmem:[%s487] sm:$0xff] %v1229
    %v1231 = vld [vmem:[%s563] sm:$0xff]
    %1232 = vmatprep.subr.mxu0 0.0
    %1233 = vmatpush1.msra.mxu0 %v95
    %1234 = vmatprep.subr.mxu0 0.0
    %1235 = vmatpush1.msra.mxu0 %v96
    %1236 = vmatprep.subr.mxu0 0.0
    %1237 = vmatpush1.msra.mxu0 %v97
    %1238 = vmatprep.subr.mxu0 0.0
    %1239 = vmatpush1.msra.mxu0 %v98
    %1240 = vmatprep.subr.mxu0 0.0
    %1241 = vmatpush1.msra.mxu0 %v99
    %1242 = vmatprep.subr.mxu0 0.0
    %1243 = vmatpush1.msra.mxu0 %v100
    %1244 = vmatprep.subr.mxu0 0.0
    %1245 = vmatpush1.msra.mxu0 %v101
    %1246 = vmatprep.subr.mxu0 0.0
    %1247 = vmatpush1.msra.mxu0 %v102
    %1248 = vmatprep.subr.mxu0 0.0
    %1249 = vmatpush1.msra.mxu0 %v103
    %1250 = vmatprep.subr.mxu0 0.0
    %1251 = vmatpush1.msra.mxu0 %v104
    %1252 = vmatprep.subr.mxu0 0.0
    %1253 = vmatpush1.msra.mxu0 %v105
    %1254 = vmatprep.subr.mxu0 0.0
    %1255 = vmatpush1.msra.mxu0 %v106
    %1256 = vmatprep.subr.mxu0 0.0
    %1257 = vmatpush1.msra.mxu0 %v107
    %1258 = vmatprep.subr.mxu0 0.0
    %1259 = vmatpush1.msra.mxu0 %v108
    %1260 = vmatprep.subr.mxu0 0.0
    %1261 = vmatpush1.msra.mxu0 %v109
    %1262 = vmatprep.subr.mxu0 0.0
    %1263 = vmatpush1.msra.mxu0 %v110
    %1264 = vmatprep.subr.mxu0 0.0
    %1265 = vmatpush1.msra.mxu0 0.0
    %1266 = vmatprep.subr.mxu0 0.0
    %1267 = vmatpush1.msra.mxu0 0.0
    %1268 = vmatprep.subr.mxu0 0.0
    %1269 = vmatpush1.msra.mxu0 0.0
    %1270 = vmatprep.subr.mxu0 0.0
    %1271 = vmatpush1.msra.mxu0 0.0
    %1272 = vmatprep.subr.mxu0 0.0
    %1273 = vmatpush1.msra.mxu0 0.0
    %1274 = vmatprep.subr.mxu0 0.0
    %1275 = vmatpush1.msra.mxu0 0.0
    %1276 = vmatprep.subr.mxu0 0.0
    %1277 = vmatpush1.msra.mxu0 0.0
    %1278 = vmatprep.subr.mxu0 0.0
    %1279 = vmatpush1.msra.mxu0 0.0
    %1280 = vmatprep.subr.mxu0 0.0
    %1281 = vmatpush1.msra.mxu0 0.0
    %1282 = vmatprep.subr.mxu0 0.0
    %1283 = vmatpush1.msra.mxu0 0.0
    %1284 = vmatprep.subr.mxu0 0.0
    %1285 = vmatpush1.msra.mxu0 0.0
    %1286 = vmatprep.subr.mxu0 0.0
    %1287 = vmatpush1.msra.mxu0 0.0
    %1288 = vmatprep.subr.mxu0 0.0
    %1289 = vmatpush1.msra.mxu0 0.0
    %1290 = vmatprep.subr.mxu0 0.0
    %1291 = vmatpush1.msra.mxu0 0.0
    %1292 = vmatprep.subr.mxu0 0.0
    %1293 = vmatpush1.msra.mxu0 0.0
    %1294 = vmatprep.subr.mxu0 0.0
    %1295 = vmatpush1.msra.mxu0 0.0
    %1296 = vmatprep.mubr.f32.mxu0 0.0
    %1297 = vmatmul.mubr.f32.gmra.mrb[0].mxu0 %v1229
    %v1298 = vpop.f32.mrb[0].mxu0
    %v1299 = vadd.f32 0.0, %v1298
    %v1300 = vpop.f32.mrb[0].mxu0
    %1301 = vdwg.mxu0
    %v1302 = vadd.f32 %v1231, %v1299
    %v1303 = vtanh.pop %v1302
    %1304 = vst [vmem:[%s563] sm:$0xff] %v1303
    %v1305 = vld [vmem:[%s639] sm:$0xff]
    %1306 = vmatprep.subr.mxu0 0.0
    %1307 = vmatpush1.msra.mxu0 %v95
    %1308 = vmatprep.subr.mxu0 0.0
    %1309 = vmatpush1.msra.mxu0 %v96
    %1310 = vmatprep.subr.mxu0 0.0
    %1311 = vmatpush1.msra.mxu0 %v97
    %1312 = vmatprep.subr.mxu0 0.0
    %1313 = vmatpush1.msra.mxu0 %v98
    %1314 = vmatprep.subr.mxu0 0.0
    %1315 = vmatpush1.msra.mxu0 %v99
    %1316 = vmatprep.subr.mxu0 0.0
    %1317 = vmatpush1.msra.mxu0 %v100
    %1318 = vmatprep.subr.mxu0 0.0
    %1319 = vmatpush1.msra.mxu0 %v101
    %1320 = vmatprep.subr.mxu0 0.0
    %1321 = vmatpush1.msra.mxu0 %v102
    %1322 = vmatprep.subr.mxu0 0.0
    %1323 = vmatpush1.msra.mxu0 %v103
    %1324 = vmatprep.subr.mxu0 0.0
    %1325 = vmatpush1.msra.mxu0 %v104
    %1326 = vmatprep.subr.mxu0 0.0
    %1327 = vmatpush1.msra.mxu0 %v105
    %1328 = vmatprep.subr.mxu0 0.0
    %1329 = vmatpush1.msra.mxu0 %v106
    %1330 = vmatprep.subr.mxu0 0.0
    %1331 = vmatpush1.msra.mxu0 %v107
    %1332 = vmatprep.subr.mxu0 0.0
    %1333 = vmatpush1.msra.mxu0 %v108
    %1334 = vmatprep.subr.mxu0 0.0
    %1335 = vmatpush1.msra.mxu0 %v109
    %1336 = vmatprep.subr.mxu0 0.0
    %1337 = vmatpush1.msra.mxu0 %v110
    %1338 = vmatprep.subr.mxu0 0.0
    %1339 = vmatpush1.msra.mxu0 0.0
    %1340 = vmatprep.subr.mxu0 0.0
    %1341 = vmatpush1.msra.mxu0 0.0
    %1342 = vmatprep.subr.mxu0 0.0
    %1343 = vmatpush1.msra.mxu0 0.0
    %1344 = vmatprep.subr.mxu0 0.0
    %1345 = vmatpush1.msra.mxu0 0.0
    %1346 = vmatprep.subr.mxu0 0.0
    %1347 = vmatpush1.msra.mxu0 0.0
    %1348 = vmatprep.subr.mxu0 0.0
    %1349 = vmatpush1.msra.mxu0 0.0
    %1350 = vmatprep.subr.mxu0 0.0
    %1351 = vmatpush1.msra.mxu0 0.0
    %1352 = vmatprep.subr.mxu0 0.0
    %1353 = vmatpush1.msra.mxu0 0.0
    %1354 = vmatprep.subr.mxu0 0.0
    %1355 = vmatpush1.msra.mxu0 0.0
    %1356 = vmatprep.subr.mxu0 0.0
    %1357 = vmatpush1.msra.mxu0 0.0
    %1358 = vmatprep.subr.mxu0 0.0
    %1359 = vmatpush1.msra.mxu0 0.0
    %1360 = vmatprep.subr.mxu0 0.0
    %1361 = vmatpush1.msra.mxu0 0.0
    %1362 = vmatprep.subr.mxu0 0.0
    %1363 = vmatpush1.msra.mxu0 0.0
    %1364 = vmatprep.subr.mxu0 0.0
    %1365 = vmatpush1.msra.mxu0 0.0
    %1366 = vmatprep.subr.mxu0 0.0
    %1367 = vmatpush1.msra.mxu0 0.0
    %1368 = vmatprep.subr.mxu0 0.0
    %1369 = vmatpush1.msra.mxu0 0.0
    %1370 = vmatprep.mubr.f32.mxu0 0.0
    %1371 = vmatmul.mubr.f32.gmra.mrb[0].mxu0 %v1303
    %v1372 = vpop.f32.mrb[0].mxu0
    %v1373 = vadd.f32 0.0, %v1372
    %v1374 = vpop.f32.mrb[0].mxu0
    %1375 = vdwg.mxu0
    %v1376 = vadd.f32 %v1305, %v1373
    %v1377 = vtanh.pop %v1376
    %1378 = vst [vmem:[%s639] sm:$0xff] %v1377
    %v1379 = vld [vmem:[%s715] sm:$0xff]
    %1380 = vmatprep.subr.mxu0 0.0
    %1381 = vmatpush1.msra.mxu0 %v95
    %1382 = vmatprep.subr.mxu0 0.0
    %1383 = vmatpush1.msra.mxu0 %v96
    %1384 = vmatprep.subr.mxu0 0.0
    %1385 = vmatpush1.msra.mxu0 %v97
    %1386 = vmatprep.subr.mxu0 0.0
    %1387 = vmatpush1.msra.mxu0 %v98
    %1388 = vmatprep.subr.mxu0 0.0
    %1389 = vmatpush1.msra.mxu0 %v99
    %1390 = vmatprep.subr.mxu0 0.0
    %1391 = vmatpush1.msra.mxu0 %v100
    %1392 = vmatprep.subr.mxu0 0.0
    %1393 = vmatpush1.msra.mxu0 %v101
    %1394 = vmatprep.subr.mxu0 0.0
    %1395 = vmatpush1.msra.mxu0 %v102
    %1396 = vmatprep.subr.mxu0 0.0
    %1397 = vmatpush1.msra.mxu0 %v103
    %1398 = vmatprep.subr.mxu0 0.0
    %1399 = vmatpush1.msra.mxu0 %v104
    %1400 = vmatprep.subr.mxu0 0.0
    %1401 = vmatpush1.msra.mxu0 %v105
    %1402 = vmatprep.subr.mxu0 0.0
    %1403 = vmatpush1.msra.mxu0 %v106
    %1404 = vmatprep.subr.mxu0 0.0
    %1405 = vmatpush1.msra.mxu0 %v107
    %1406 = vmatprep.subr.mxu0 0.0
    %1407 = vmatpush1.msra.mxu0 %v108
    %1408 = vmatprep.subr.mxu0 0.0
    %1409 = vmatpush1.msra.mxu0 %v109
    %1410 = vmatprep.subr.mxu0 0.0
    %1411 = vmatpush1.msra.mxu0 %v110
    %1412 = vmatprep.subr.mxu0 0.0
    %1413 = vmatpush1.msra.mxu0 0.0
    %1414 = vmatprep.subr.mxu0 0.0
    %1415 = vmatpush1.msra.mxu0 0.0
    %1416 = vmatprep.subr.mxu0 0.0
    %1417 = vmatpush1.msra.mxu0 0.0
    %1418 = vmatprep.subr.mxu0 0.0
    %1419 = vmatpush1.msra.mxu0 0.0
    %1420 = vmatprep.subr.mxu0 0.0
    %1421 = vmatpush1.msra.mxu0 0.0
    %1422 = vmatprep.subr.mxu0 0.0
    %1423 = vmatpush1.msra.mxu0 0.0
    %1424 = vmatprep.subr.mxu0 0.0
    %1425 = vmatpush1.msra.mxu0 0.0
    %1426 = vmatprep.subr.mxu0 0.0
    %1427 = vmatpush1.msra.mxu0 0.0
    %1428 = vmatprep.subr.mxu0 0.0
    %1429 = vmatpush1.msra.mxu0 0.0
    %1430 = vmatprep.subr.mxu0 0.0
    %1431 = vmatpush1.msra.mxu0 0.0
    %1432 = vmatprep.subr.mxu0 0.0
    %1433 = vmatpush1.msra.mxu0 0.0
    %1434 = vmatprep.subr.mxu0 0.0
    %1435 = vmatpush1.msra.mxu0 0.0
    %1436 = vmatprep.subr.mxu0 0.0
    %1437 = vmatpush1.msra.mxu0 0.0
    %1438 = vmatprep.subr.mxu0 0.0
    %1439 = vmatpush1.msra.mxu0 0.0
    %1440 = vmatprep.subr.mxu0 0.0
    %1441 = vmatpush1.msra.mxu0 0.0
    %1442 = vmatprep.subr.mxu0 0.0
    %1443 = vmatpush1.msra.mxu0 0.0
    %1444 = vmatprep.mubr.f32.mxu0 0.0
    %1445 = vmatmul.mubr.f32.gmra.mrb[0].mxu0 %v1377
    %v1446 = vpop.f32.mrb[0].mxu0
    %v1447 = vadd.f32 0.0, %v1446
    %v1448 = vpop.f32.mrb[0].mxu0
    %1449 = vdwg.mxu0
    %v1450 = vadd.f32 %v1379, %v1447
    %v1451 = vtanh.pop %v1450
    %1452 = vst [vmem:[%s715] sm:$0xff] %v1451
    %1453 = vst [vmem:[#allocation11] sm:$0xff] %v714
    %s1454 = scalar_lea.vmem [#allocation11], 8
    %1455 = vst [vmem:[%s1454] sm:$0xff] %v1451
    // Predicated region
    $region38: #{tpu_custom_call.1} parent=1 // pred_check
      _
    $region39: #{tpu_custom_call.1} parent=1 // pred_check_branch
      %1457 = sbr.rel (0) target = $region41
    $region40: #{tpu_custom_call.1} parent=1 // pred_region
      %s1459 = ssub.s32 1024, 1024
      %1460 = vsyncadd [#allocation4], %s1459
      %s1461 = sshll.u32 [#allocation10], 4
      %s1462 = int_to_ptr.vmem [resolvable:$true] %s1461
      %1467 = dma.vmem_to_hbm [thread:$0]  %s1462, 1024, %s5, [#allocation4], 128, 128, 8
    $region41: #{tpu_custom_call.1} parent=1 // pred_fallthru
      _
    // Predicated region
    $region42: #{tpu_custom_call.1} parent=1 // pred_check
      _
    $region43: #{tpu_custom_call.1} parent=1 // pred_check_branch
      %1469 = sbr.rel (0) target = $region45
    $region44: #{tpu_custom_call.1} parent=1 // pred_region
      %s1471 = ssub.s32 256, 256
      %1472 = vsyncadd [#allocation12], %s1471
      %s1473 = sshll.u32 [#allocation11], 4
      %s1474 = int_to_ptr.vmem [resolvable:$true] %s1473
      %1479 = dma.vmem_to_hbm [thread:$0]  %s1474, 256, %s6, [#allocation12], 128, 128, 8
    $region45: #{tpu_custom_call.1} parent=1 // pred_fallthru
      _
    // Predicated region
    $region46: #{tpu_custom_call.1} parent=1 // pred_check
      _
    $region47: #{tpu_custom_call.1} parent=1 // pred_check_branch
      %1481 = sbr.rel (0) target = $region49
    $region48: #{tpu_custom_call.1} parent=1 // pred_region
      %1482 = dma.done [#allocation4], 1024
    $region49: #{tpu_custom_call.1} parent=1 // pred_fallthru
      _
    // Predicated region
    $region50: #{tpu_custom_call.1} parent=1 // pred_check
      _
    $region51: #{tpu_custom_call.1} parent=1 // pred_check_branch
      %1484 = sbr.rel (0) target = $region53
    $region52: #{tpu_custom_call.1} parent=1 // pred_region
      %1485 = dma.done [#allocation12], 256
    $region53: #{tpu_custom_call.1} parent=1 // pred_fallthru
      _
    %1486 = vsyncpa [#allocation3], 1
    %1487 = vsyncpa [#allocation6], 1
    %1488 = vsyncpa [#allocation9], 1
    %1489 = vsyncpa [#allocation4], 1
    %1490 = vsyncpa [#allocation12], 1

</llo_original>
